<compile_context>
chip_gen: v6e
topology: v6e:2x2x1
jax: 0.10.0
libtpu: 0.0.40
codegen_flags: <defaults>
</compile_context>

<pallas_src>
import numpy as np
from math import log

import jax
import jax.numpy as jnp
from jax.experimental import pallas as pl
from jax.experimental.pallas import tpu as pltpu


# Bias slab row-block order (each block is C2 rows of the (7*C2, 1) slab).
_B3, _B5, _B6, _B4, _BL1, _BL2, _B7 = range(7)


# ----------------------------- Pallas kernel -------------------------------

def cdfm_kernel(x_ref, t_ref, wx_ref, wt_ref, wsq_ref, band_ref, b_ref, out_ref):
    f32 = jnp.float32
    bf16 = jnp.bfloat16
    C1 = x_ref.shape[1]
    C2 = t_ref.shape[1]

    def bias(i):                       # (C2, 1) slice of the bias slab
        return b_ref[i * C2:(i + 1) * C2, :]

    x = x_ref[0]                       # (C1, HW) f32
    t = t_ref[0]                       # (C2, HW) f32

    # ---- channel gate on the pooled column only: (avg+max pool) -> banded
    #      conv1d (as a (C2,C2)@(C2,1) matmul) -> sigmoid.  Broadcast happens
    #      only at the x_g multiply below.
    pooled = (jnp.mean(t, axis=1, keepdims=True)
              + jnp.max(t, axis=1, keepdims=True))                 # (C2, 1)
    wg = jax.nn.sigmoid(
        jnp.dot(band_ref[...], pooled, preferred_element_type=f32))  # (C2, 1)

    # ---- fused t-consuming matmul: [w6; w4b] @ t   (t dies after this)
    y_t = jnp.dot(wt_ref[...], t.astype(bf16), preferred_element_type=f32)
    t6 = jnp.maximum(y_t[0:C2] + bias(_B6), 0.0)     # conv6(t)
    p4b = y_t[C2:2 * C2]                             # conv4 partial (t half)

    # ---- fused x-consuming matmul: [w3; w5; w7b] @ x   (x dies after this)
    y_x = jnp.dot(wx_ref[...], x.astype(bf16), preferred_element_type=f32)
    x3 = jnp.maximum(y_x[0:C2] + bias(_B3), 0.0)     # conv3(x)
    x5 = jnp.maximum(y_x[C2:2 * C2] + bias(_B5), 0.0)  # conv5(x)
    p7b = y_x[2 * C2:3 * C2]                         # conv7 partial (x half)

    wl1p = wsq_ref[0:C2]          # local_att conv1, rows >= C2//4 are zero
    wl2p = wsq_ref[C2:2 * C2]     # local_att conv2, cols >= C2//4 are zero
    w4a = wsq_ref[2 * C2:3 * C2]  # conv4 half applied to x_g
    w7a = wsq_ref[3 * C2:4 * C2]  # conv7 half applied to t_l

    # ---- global branch first (frees x3 / p4b): conv3 -> *wg -> conv4
    x_g = x3 * wg                                    # (C2,1) gate lane-broadcast
    out_g = jnp.maximum(
        jnp.dot(w4a, x_g.astype(bf16), preferred_element_type=f32)
        + p4b + bias(_B4), 0.0)

    # ---- local branch: conv5 -> local_att -> gate conv6(t) -> conv7
    la = jnp.maximum(
        jnp.dot(wl1p, x5.astype(bf16), preferred_element_type=f32)
        + bias(_BL1), 0.0)                           # local_att conv1+BN+ReLU
    wl = jax.nn.sigmoid(
        jnp.dot(wl2p, la.astype(bf16), preferred_element_type=f32)
        + bias(_BL2))                                # local_att conv2+BN+Sigmoid
    t_l = wl * t6
    out_l = jnp.maximum(
        jnp.dot(w7a, t_l.astype(bf16), preferred_element_type=f32)
        + p7b + bias(_B7), 0.0)

    out_ref[0] = out_g + out_l


# ------------------------------- wrapper ------------------------------------

def cdfm_pallas(x_nchw, t_nchw, packed):
    N, C1, H, W = x_nchw.shape
    _, C2, _, _ = t_nchw.shape
    HW = H * W

    # NCHW -> (N, C, HW): pure reshape, no transpose.
    x = x_nchw.reshape(N, C1, HW)
    t = t_nchw.reshape(N, C2, HW)

    Wx, Wt, Wsq, Band, B = packed

    def full(arr):          # whole-array block, constant index map (loaded once)
        return pl.BlockSpec(arr.shape, lambda b: (0,) * arr.ndim)

    grid_spec = pltpu.PrefetchScalarGridSpec(
        num_scalar_prefetch=0,
        grid=(N,),
        in_specs=[
            pl.BlockSpec((1, C1, HW), lambda b: (b, 0, 0)),   # x
            pl.BlockSpec((1, C2, HW), lambda b: (b, 0, 0)),   # t
            full(Wx),     # [w3; w5; w7b]            (3*C2, C1)  bf16
            full(Wt),     # [w6; w4b]                (2*C2, C2)  bf16
            full(Wsq),    # [wl1p; wl2p; w4a; w7a]   (4*C2, C2)  bf16
            full(Band),   # banded ECA conv1d matrix (C2, C2)    f32
            full(B),      # bias slab                (7*C2, 1)   f32
        ],
        out_specs=pl.BlockSpec((1, C2, HW), lambda b: (b, 0, 0)),
    )

    # Advisory cost estimate so XLA schedules/overlaps this tiny call sensibly.
    macs = N * HW * (Wx.shape[0] * Wx.shape[1]
                     + Wt.shape[0] * Wt.shape[1]
                     + Wsq.shape[0] * Wsq.shape[1]) + N * C2 * C2
    flops = int(2 * macs)
    transcendentals = int(N * C2 * (HW + 1))      # sigmoid(wl) + sigmoid(wg)
    bytes_accessed = int((x.size + t.size + N * C2 * HW) * 4
                         + (Wx.size + Wt.size + Wsq.size) * 2
                         + (Band.size + B.size) * 4)

    out = pl.pallas_call(
        cdfm_kernel,
        out_shape=jax.ShapeDtypeStruct((N, C2, HW), jnp.float32),
        grid_spec=grid_spec,
        compiler_params=pltpu.CompilerParams(
            dimension_semantics=("parallel",)),
        cost_estimate=pl.CostEstimate(flops=flops,
                                      transcendentals=transcendentals,
                                      bytes_accessed=bytes_accessed),
    )(x, t, Wx, Wt, Wsq, Band, B)

    # (N, C2, HW) -> NCHW: free reshape.
    return out.reshape(N, C2, H, W)


# --------------------------- parameter building -----------------------------

def _fold_conv_bn(key, c_in, c_out, eps=1e-5):
    """1x1 conv (with bias) followed by inference-mode BatchNorm, folded into an
    effective (c_out, c_in) weight and (c_out,) bias (channels-first layout)."""
    k1, k2, k3, k4, k5, k6 = jax.random.split(key, 6)
    w = 0.1 * jax.random.normal(k1, (c_out, c_in), jnp.float32)   # torch (out,in,1,1)
    b = 0.1 * jax.random.normal(k2, (c_out,), jnp.float32)
    gamma = 1.0 + 0.1 * jax.random.normal(k3, (c_out,), jnp.float32)
    beta = 0.1 * jax.random.normal(k4, (c_out,), jnp.float32)
    mean = 0.1 * jax.random.normal(k5, (c_out,), jnp.float32)
    var = 1.0 + 0.1 * jnp.abs(jax.random.normal(k6, (c_out,), jnp.float32))
    s = gamma / jnp.sqrt(var + eps)
    return w * s[:, None], (b - mean) * s + beta


def build_cdfm_params(key, channel1, channel2):
    """Returns (raw per-layer params for the reference, packed slabs for the kernel)."""
    C1, C2 = channel1, channel2
    Cq = C2 // 4
    keys = jax.random.split(key, 8)

    # ECA conv1d kernel size per CDFM.__init__
    tt = int(abs((log(C2, 2) + 1) / 2))
    k = tt if tt % 2 else tt + 1
    pad = (k - 1) // 2
    w1d = 0.3 * jax.random.normal(keys[0], (k,), jnp.float32)

    w3, b3 = _fold_conv_bn(keys[1], C1, C2)          # conv3: C1 -> C2
    w4, b4 = _fold_conv_bn(keys[2], 2 * C2, C2)      # conv4: 2*C2 -> C2
    w5, b5 = _fold_conv_bn(keys[3], C1, C2)          # conv5: C1 -> C2
    wl1, bl1 = _fold_conv_bn(keys[4], C2, Cq)        # local_att conv1
    wl2, bl2 = _fold_conv_bn(keys[5], Cq, C2)        # local_att conv2
    w6, b6 = _fold_conv_bn(keys[6], C2, C2)          # conv6: C2 -> C2
    w7, b7 = _fold_conv_bn(keys[7], C2 + C1, C2)     # conv7: C2+C1 -> C2

    raw = dict(w1d=w1d, w3=w3, b3=b3, w4=w4, b4=b4, w5=w5, b5=b5,
               wl1=wl1, bl1=bl1, wl2=wl2, bl2=bl2, w6=w6, b6=b6, w7=w7, b7=b7)

    # --- packing for the kernel ---
    # Banded (C2, C2) matrix so the channel-wise conv1d is a matmul on the
    # pooled column:  out[o] = sum_j w1d[j] * in[o + j - pad]   (zero padded).
    band = np.zeros((C2, C2), np.float32)
    w1d_np = np.asarray(w1d)
    for o in range(C2):
        for j in range(k):
            i = o + j - pad
            if 0 <= i < C2:
                band[o, i] = w1d_np[j]

    # local_att weights padded to uniform (C2, C2) shapes (zero pad is exact:
    # relu(0+0)=0 rows feed zero columns of wl2_pad).
    wl1p = np.zeros((C2, C2), np.float32)
    wl1p[:Cq, :] = np.asarray(wl1)
    wl2p = np.zeros((C2, C2), np.float32)
    wl2p[:, :Cq] = np.asarray(wl2)
    bl1p = np.zeros((C2,), np.float32)
    bl1p[:Cq] = np.asarray(bl1)

    # conv4 / conv7 split by which activation each half consumes
    # (forward: conv4(cat(x_g, t)),  conv7(cat(t_l, x))).
    w4a, w4b = w4[:, :C2], w4[:, C2:]        # x_g half, t half
    w7a, w7b = w7[:, :C2], w7[:, C2:]        # t_l half, x half

    bf16 = jnp.bfloat16
    Wx = jnp.concatenate([w3, w5, w7b], axis=0).astype(bf16)          # (3*C2, C1)
    Wt = jnp.concatenate([w6, w4b], axis=0).astype(bf16)              # (2*C2, C2)
    Wsq = jnp.concatenate([jnp.asarray(wl1p), jnp.asarray(wl2p),
                           w4a, w7a], axis=0).astype(bf16)            # (4*C2, C2)
    Band = jnp.asarray(band)                                          # (C2, C2) f32
    # bias slab order must match _B3, _B5, _B6, _B4, _BL1, _BL2, _B7
    B = jnp.concatenate([b3, b5, b6, b4, jnp.asarray(bl1p),
                         bl2, b7], axis=0)[:, None]                   # (7*C2, 1) f32

    packed = (Wx, Wt, Wsq, Band, B)
    return raw, packed


# ----------------------------- pure-JAX reference ----------------------------

def cdfm_ref(x_nchw, t_nchw, raw):
    """Direct translation of CDFM.forward() (folded BN), channels-first, f32."""
    N, C1, H, W = x_nchw.shape
    C2 = raw['w3'].shape[0]
    HW = H * W
    x = x_nchw.reshape(N, C1, HW)
    t = t_nchw.reshape(N, C2, HW)

    mm = lambda w, a: jnp.einsum('oi,nip->nop', w, a)
    relu = lambda v: jnp.maximum(v, 0.0)
    cbr = lambda a, w, b: relu(mm(w, a) + b[None, :, None])

    # gate: (avg + max pool) -> conv1d over channels -> sigmoid
    pooled = jnp.mean(t, axis=2) + jnp.max(t, axis=2)                # (N, C2)
    k = raw['w1d'].shape[0]
    pad = (k - 1) // 2
    pin = jnp.pad(pooled, ((0, 0), (pad, pad)))
    g = sum(raw['w1d'][j] * pin[:, j:j + C2] for j in range(k))
    wg = jax.nn.sigmoid(g)[:, :, None]                               # (N, C2, 1)

    x_g = cbr(x, raw['w3'], raw['b3']) * wg
    x_g = cbr(jnp.concatenate([x_g, t], axis=1), raw['w4'], raw['b4'])

    wl = cbr(x, raw['w5'], raw['b5'])
    la = cbr(wl, raw['wl1'], raw['bl1'])
    wl = jax.nn.sigmoid(mm(raw['wl2'], la) + raw['bl2'][None, :, None])
    t_l = wl * cbr(t, raw['w6'], raw['b6'])
    t_l = cbr(jnp.concatenate([t_l, x], axis=1), raw['w7'], raw['b7'])

    out = x_g + t_l
    return out.reshape(N, C2, H, W)


# ---------------------------------- main -------------------------------------

if __name__ == "__main__":
    channel1, channel2 = 16, 32
    N, H, W = 2, 16, 16

    key = jax.random.PRNGKey(0)
    kx, kt, kp = jax.random.split(key, 3)
    x = jax.random.normal(kx, (N, channel1, H, W), jnp.float32)   # NCHW
    t = jax.random.normal(kt, (N, channel2, H, W), jnp.float32)   # NCHW
    raw, packed = build_cdfm_params(kp, channel1, channel2)

    out = jax.block_until_ready(cdfm_pallas(x, t, packed))
    ref = jax.block_until_ready(cdfm_ref(x, t, raw))

    # Matmul inputs are bf16 (f32 accumulation); tolerance sized for bf16-level
    # quantization through the two branches / sigmoid gates.
    np.testing.assert_allclose(np.asarray(out), np.asarray(ref),
                               rtol=3e-2, atol=3e-2)
    print("KERNEL_OK")
</pallas_src>

<mosaic_0001>
module attributes {stable_mosaic.version = 11 : i64} {
  func.func @cdfm_kernel(%arg0: i32, %arg1: memref<1x16x256xf32, #tpu.memory_space<vmem>>, %arg2: memref<1x32x256xf32, #tpu.memory_space<vmem>>, %arg3: memref<96x16xbf16, #tpu.memory_space<vmem>>, %arg4: memref<64x32xbf16, #tpu.memory_space<vmem>>, %arg5: memref<128x32xbf16, #tpu.memory_space<vmem>>, %arg6: memref<32x32xf32, #tpu.memory_space<vmem>>, %arg7: memref<224x1xf32, #tpu.memory_space<vmem>>, %arg8: memref<1x32x256xf32, #tpu.memory_space<vmem>>) attributes {dimension_semantics = [#tpu.dimension_semantics<parallel>], iteration_bounds = array<i64: 2>, scalar_prefetch = 0 : i64, scratch_operands = 0 : i64, tpu.core_type = #tpu.core_type<tc>, window_params = [{transform_indices = @transform_0, window_bounds = array<i64: 1, 16, 256>}, {transform_indices = @transform_1, window_bounds = array<i64: 1, 32, 256>}, {pipeline_mode = #tpu.pipeline_mode<synchronous>, transform_indices = @transform_2, window_bounds = array<i64: 96, 16>}, {pipeline_mode = #tpu.pipeline_mode<synchronous>, transform_indices = @transform_3, window_bounds = array<i64: 64, 32>}, {pipeline_mode = #tpu.pipeline_mode<synchronous>, transform_indices = @transform_4, window_bounds = array<i64: 128, 32>}, {pipeline_mode = #tpu.pipeline_mode<synchronous>, transform_indices = @transform_5, window_bounds = array<i64: 32, 32>}, {pipeline_mode = #tpu.pipeline_mode<synchronous>, transform_indices = @transform_6, window_bounds = array<i64: 224, 1>}, {transform_indices = @transform_7, window_bounds = array<i64: 1, 32, 256>}]} {
    %c0 = arith.constant 0 : index
    %c0_0 = arith.constant 0 : index
    %c0_1 = arith.constant 0 : index
    %0 = vector.load %arg1[%c0, %c0_0, %c0_1] : memref<1x16x256xf32, #tpu.memory_space<vmem>>, vector<1x16x256xf32>
    %1 = vector.shape_cast %0 : vector<1x16x256xf32> to vector<16x256xf32>
    %c0_2 = arith.constant 0 : index
    %c0_3 = arith.constant 0 : index
    %c0_4 = arith.constant 0 : index
    %2 = vector.load %arg2[%c0_2, %c0_3, %c0_4] : memref<1x32x256xf32, #tpu.memory_space<vmem>>, vector<1x32x256xf32>
    %3 = vector.shape_cast %2 : vector<1x32x256xf32> to vector<32x256xf32>
    %cst = arith.constant dense<0.000000e+00> : vector<32xf32>
    %4 = vector.multi_reduction <add>, %3, %cst [1] : vector<32x256xf32> to vector<32xf32>
    %5 = vector.shape_cast %4 : vector<32xf32> to vector<32x1xf32>
    %cst_5 = arith.constant 2.560000e+02 : f32
    %6 = vector.broadcast %cst_5 : f32 to vector<32x1xf32>
    %7 = arith.divf %5, %6 : vector<32x1xf32>
    %cst_6 = arith.constant dense<0xFF800000> : vector<32xf32>
    %8 = vector.multi_reduction <maximumf>, %3, %cst_6 [1] : vector<32x256xf32> to vector<32xf32>
    %9 = vector.shape_cast %8 : vector<32xf32> to vector<32x1xf32>
    %10 = arith.addf %7, %9 : vector<32x1xf32>
    %c0_7 = arith.constant 0 : index
    %c0_8 = arith.constant 0 : index
    %11 = vector.load %arg6[%c0_7, %c0_8] : memref<32x32xf32, #tpu.memory_space<vmem>>, vector<32x32xf32>
    %cst_9 = arith.constant dense<0.000000e+00> : vector<32x1xf32>
    %12 = tpu.matmul %11, %10, %cst_9 {dimension_numbers = #tpu.dot_dimension_numbers<[1], [0], [0], [1], [0, 0, 1, 1], [], []>} : vector<32x32xf32>, vector<32x1xf32>, vector<32x1xf32> -> vector<32x1xf32>
    %13 = arith.negf %12 : vector<32x1xf32>
    %14 = math.exp %13 : vector<32x1xf32>
    %cst_10 = arith.constant 1.000000e+00 : f32
    %15 = vector.broadcast %cst_10 : f32 to vector<32x1xf32>
    %16 = arith.addf %15, %14 : vector<32x1xf32>
    %17 = arith.divf %15, %16 : vector<32x1xf32>
    %c0_11 = arith.constant 0 : index
    %c0_12 = arith.constant 0 : index
    %18 = vector.load %arg4[%c0_11, %c0_12] : memref<64x32xbf16, #tpu.memory_space<vmem>>, vector<64x32xbf16>
    %19 = arith.truncf %3 : vector<32x256xf32> to vector<32x256xbf16>
    %cst_13 = arith.constant dense<0.000000e+00> : vector<64x256xf32>
    %20 = tpu.matmul %18, %19, %cst_13 {dimension_numbers = #tpu.dot_dimension_numbers<[1], [0], [0], [1], [0, 0, 1, 1], [], []>} : vector<64x32xbf16>, vector<32x256xbf16>, vector<64x256xf32> -> vector<64x256xf32>
    %21 = vector.extract_strided_slice %20 {offsets = [0, 0], sizes = [32, 256], strides = [1, 1]} : vector<64x256xf32> to vector<32x256xf32>
    %c64 = arith.constant 64 : index
    %c0_14 = arith.constant 0 : index
    %22 = vector.load %arg7[%c64, %c0_14] : memref<224x1xf32, #tpu.memory_space<vmem>>, vector<32x1xf32>
    %23 = vector.broadcast %22 : vector<32x1xf32> to vector<32x256xf32>
    %24 = arith.addf %21, %23 : vector<32x256xf32>
    %cst_15 = arith.constant 0.000000e+00 : f32
    %25 = vector.broadcast %cst_15 : f32 to vector<32x256xf32>
    %26 = arith.maximumf %24, %25 : vector<32x256xf32>
    %27 = vector.extract_strided_slice %20 {offsets = [32, 0], sizes = [32, 256], strides = [1, 1]} : vector<64x256xf32> to vector<32x256xf32>
    %c0_16 = arith.constant 0 : index
    %c0_17 = arith.constant 0 : index
    %28 = vector.load %arg3[%c0_16, %c0_17] : memref<96x16xbf16, #tpu.memory_space<vmem>>, vector<96x16xbf16>
    %29 = arith.truncf %1 : vector<16x256xf32> to vector<16x256xbf16>
    %cst_18 = arith.constant dense<0.000000e+00> : vector<96x256xf32>
    %30 = tpu.matmul %28, %29, %cst_18 {dimension_numbers = #tpu.dot_dimension_numbers<[1], [0], [0], [1], [0, 0, 1, 1], [], []>} : vector<96x16xbf16>, vector<16x256xbf16>, vector<96x256xf32> -> vector<96x256xf32>
    %31 = vector.extract_strided_slice %30 {offsets = [0, 0], sizes = [32, 256], strides = [1, 1]} : vector<96x256xf32> to vector<32x256xf32>
    %c0_19 = arith.constant 0 : index
    %c0_20 = arith.constant 0 : index
    %32 = vector.load %arg7[%c0_19, %c0_20] : memref<224x1xf32, #tpu.memory_space<vmem>>, vector<32x1xf32>
    %33 = vector.broadcast %32 : vector<32x1xf32> to vector<32x256xf32>
    %34 = arith.addf %31, %33 : vector<32x256xf32>
    %cst_21 = arith.constant 0.000000e+00 : f32
    %35 = vector.broadcast %cst_21 : f32 to vector<32x256xf32>
    %36 = arith.maximumf %34, %35 : vector<32x256xf32>
    %37 = vector.extract_strided_slice %30 {offsets = [32, 0], sizes = [32, 256], strides = [1, 1]} : vector<96x256xf32> to vector<32x256xf32>
    %c32 = arith.constant 32 : index
    %c0_22 = arith.constant 0 : index
    %38 = vector.load %arg7[%c32, %c0_22] : memref<224x1xf32, #tpu.memory_space<vmem>>, vector<32x1xf32>
    %39 = vector.broadcast %38 : vector<32x1xf32> to vector<32x256xf32>
    %40 = arith.addf %37, %39 : vector<32x256xf32>
    %cst_23 = arith.constant 0.000000e+00 : f32
    %41 = vector.broadcast %cst_23 : f32 to vector<32x256xf32>
    %42 = arith.maximumf %40, %41 : vector<32x256xf32>
    %43 = vector.extract_strided_slice %30 {offsets = [64, 0], sizes = [32, 256], strides = [1, 1]} : vector<96x256xf32> to vector<32x256xf32>
    %c0_24 = arith.constant 0 : index
    %c0_25 = arith.constant 0 : index
    %44 = vector.load %arg5[%c0_24, %c0_25] : memref<128x32xbf16, #tpu.memory_space<vmem>>, vector<32x32xbf16>
    %c32_26 = arith.constant 32 : index
    %c0_27 = arith.constant 0 : index
    %45 = vector.load %arg5[%c32_26, %c0_27] : memref<128x32xbf16, #tpu.memory_space<vmem>>, vector<32x32xbf16>
    %c64_28 = arith.constant 64 : index
    %c0_29 = arith.constant 0 : index
    %46 = vector.load %arg5[%c64_28, %c0_29] : memref<128x32xbf16, #tpu.memory_space<vmem>>, vector<32x32xbf16>
    %c96 = arith.constant 96 : index
    %c0_30 = arith.constant 0 : index
    %47 = vector.load %arg5[%c96, %c0_30] : memref<128x32xbf16, #tpu.memory_space<vmem>>, vector<32x32xbf16>
    %48 = vector.broadcast %17 : vector<32x1xf32> to vector<32x256xf32>
    %49 = arith.mulf %36, %48 : vector<32x256xf32>
    %50 = arith.truncf %49 : vector<32x256xf32> to vector<32x256xbf16>
    %cst_31 = arith.constant dense<0.000000e+00> : vector<32x256xf32>
    %51 = tpu.matmul %46, %50, %cst_31 {dimension_numbers = #tpu.dot_dimension_numbers<[1], [0], [0], [1], [0, 0, 1, 1], [], []>} : vector<32x32xbf16>, vector<32x256xbf16>, vector<32x256xf32> -> vector<32x256xf32>
    %52 = arith.addf %51, %27 : vector<32x256xf32>
    %c96_32 = arith.constant 96 : index
    %c0_33 = arith.constant 0 : index
    %53 = vector.load %arg7[%c96_32, %c0_33] : memref<224x1xf32, #tpu.memory_space<vmem>>, vector<32x1xf32>
    %54 = vector.broadcast %53 : vector<32x1xf32> to vector<32x256xf32>
    %55 = arith.addf %52, %54 : vector<32x256xf32>
    %cst_34 = arith.constant 0.000000e+00 : f32
    %56 = vector.broadcast %cst_34 : f32 to vector<32x256xf32>
    %57 = arith.maximumf %55, %56 : vector<32x256xf32>
    %58 = arith.truncf %42 : vector<32x256xf32> to vector<32x256xbf16>
    %cst_35 = arith.constant dense<0.000000e+00> : vector<32x256xf32>
    %59 = tpu.matmul %44, %58, %cst_35 {dimension_numbers = #tpu.dot_dimension_numbers<[1], [0], [0], [1], [0, 0, 1, 1], [], []>} : vector<32x32xbf16>, vector<32x256xbf16>, vector<32x256xf32> -> vector<32x256xf32>
    %c128 = arith.constant 128 : index
    %c0_36 = arith.constant 0 : index
    %60 = vector.load %arg7[%c128, %c0_36] : memref<224x1xf32, #tpu.memory_space<vmem>>, vector<32x1xf32>
    %61 = vector.broadcast %60 : vector<32x1xf32> to vector<32x256xf32>
    %62 = arith.addf %59, %61 : vector<32x256xf32>
    %cst_37 = arith.constant 0.000000e+00 : f32
    %63 = vector.broadcast %cst_37 : f32 to vector<32x256xf32>
    %64 = arith.maximumf %62, %63 : vector<32x256xf32>
    %65 = arith.truncf %64 : vector<32x256xf32> to vector<32x256xbf16>
    %cst_38 = arith.constant dense<0.000000e+00> : vector<32x256xf32>
    %66 = tpu.matmul %45, %65, %cst_38 {dimension_numbers = #tpu.dot_dimension_numbers<[1], [0], [0], [1], [0, 0, 1, 1], [], []>} : vector<32x32xbf16>, vector<32x256xbf16>, vector<32x256xf32> -> vector<32x256xf32>
    %c160 = arith.constant 160 : index
    %c0_39 = arith.constant 0 : index
    %67 = vector.load %arg7[%c160, %c0_39] : memref<224x1xf32, #tpu.memory_space<vmem>>, vector<32x1xf32>
    %68 = vector.broadcast %67 : vector<32x1xf32> to vector<32x256xf32>
    %69 = arith.addf %66, %68 : vector<32x256xf32>
    %70 = arith.negf %69 : vector<32x256xf32>
    %71 = math.exp %70 : vector<32x256xf32>
    %cst_40 = arith.constant 1.000000e+00 : f32
    %72 = vector.broadcast %cst_40 : f32 to vector<32x256xf32>
    %73 = arith.addf %72, %71 : vector<32x256xf32>
    %74 = arith.divf %72, %73 : vector<32x256xf32>
    %75 = arith.mulf %74, %26 : vector<32x256xf32>
    %76 = arith.truncf %75 : vector<32x256xf32> to vector<32x256xbf16>
    %cst_41 = arith.constant dense<0.000000e+00> : vector<32x256xf32>
    %77 = tpu.matmul %47, %76, %cst_41 {dimension_numbers = #tpu.dot_dimension_numbers<[1], [0], [0], [1], [0, 0, 1, 1], [], []>} : vector<32x32xbf16>, vector<32x256xbf16>, vector<32x256xf32> -> vector<32x256xf32>
    %78 = arith.addf %77, %43 : vector<32x256xf32>
    %c192 = arith.constant 192 : index
    %c0_42 = arith.constant 0 : index
    %79 = vector.load %arg7[%c192, %c0_42] : memref<224x1xf32, #tpu.memory_space<vmem>>, vector<32x1xf32>
    %80 = vector.broadcast %79 : vector<32x1xf32> to vector<32x256xf32>
    %81 = arith.addf %78, %80 : vector<32x256xf32>
    %cst_43 = arith.constant 0.000000e+00 : f32
    %82 = vector.broadcast %cst_43 : f32 to vector<32x256xf32>
    %83 = arith.maximumf %81, %82 : vector<32x256xf32>
    %84 = arith.addf %57, %83 : vector<32x256xf32>
    %c0_44 = arith.constant 0 : index
    %c0_45 = arith.constant 0 : index
    %c0_46 = arith.constant 0 : index
    %85 = vector.load %arg8[%c0_44, %c0_45, %c0_46] : memref<1x32x256xf32, #tpu.memory_space<vmem>>, vector<1x32x256xf32>
    %86 = vector.shape_cast %85 : vector<1x32x256xf32> to vector<32x256xf32>
    %87 = vector.shape_cast %84 : vector<32x256xf32> to vector<1x32x256xf32>
    tpu.vector_store %arg8[%c0_44, %c0_45, %c0_46], %87 {strides = array<i32>} : memref<1x32x256xf32, #tpu.memory_space<vmem>>, vector<1x32x256xf32>,
    return
  }
  func.func @transform_0(%arg0: i32) -> (i32, i32, i32) {
    %c0_i32 = arith.constant 0 : i32
    %c0_i32_0 = arith.constant 0 : i32
    %c0_i32_1 = arith.constant 0 : i32
    return %arg0, %c0_i32, %c0_i32_0 : i32, i32, i32
  }
  func.func @transform_1(%arg0: i32) -> (i32, i32, i32) {
    %c0_i32 = arith.constant 0 : i32
    %c0_i32_0 = arith.constant 0 : i32
    %c0_i32_1 = arith.constant 0 : i32
    return %arg0, %c0_i32, %c0_i32_0 : i32, i32, i32
  }
  func.func @transform_2(%arg0: i32) -> (i32, i32) {
    %c0_i32 = arith.constant 0 : i32
    %c0_i32_0 = arith.constant 0 : i32
    %c0_i32_1 = arith.constant 0 : i32
    return %c0_i32, %c0_i32_0 : i32, i32
  }
  func.func @transform_3(%arg0: i32) -> (i32, i32) {
    %c0_i32 = arith.constant 0 : i32
    %c0_i32_0 = arith.constant 0 : i32
    %c0_i32_1 = arith.constant 0 : i32
    return %c0_i32, %c0_i32_0 : i32, i32
  }
  func.func @transform_4(%arg0: i32) -> (i32, i32) {
    %c0_i32 = arith.constant 0 : i32
    %c0_i32_0 = arith.constant 0 : i32
    %c0_i32_1 = arith.constant 0 : i32
    return %c0_i32, %c0_i32_0 : i32, i32
  }
  func.func @transform_5(%arg0: i32) -> (i32, i32) {
    %c0_i32 = arith.constant 0 : i32
    %c0_i32_0 = arith.constant 0 : i32
    %c0_i32_1 = arith.constant 0 : i32
    return %c0_i32, %c0_i32_0 : i32, i32
  }
  func.func @transform_6(%arg0: i32) -> (i32, i32) {
    %c0_i32 = arith.constant 0 : i32
    %c0_i32_0 = arith.constant 0 : i32
    %c0_i32_1 = arith.constant 0 : i32
    return %c0_i32, %c0_i32_0 : i32, i32
  }
  func.func @transform_7(%arg0: i32) -> (i32, i32, i32) {
    %c0_i32 = arith.constant 0 : i32
    %c0_i32_0 = arith.constant 0 : i32
    %c0_i32_1 = arith.constant 0 : i32
    return %arg0, %c0_i32, %c0_i32_0 : i32, i32, i32
  }
}

</mosaic_0001>

<llo_original>
// kernel: tpu_custom_call.1
$region0: #{tpu_custom_call.1}
  #allocation0 [shape = 'u32[]', space=smem, size = 0x4, offset = 0x4, fixed_abs, tag = 'smem constant byte address 0x4 - core index']
  #allocation1 [shape = 'u32[144,128]{1,0:T(1,128)}', space=vmem, size = 0x12000, scoped, tag = 'internal scratch']
  %s0 = inlined_call_operand.vmem [shape: f32[2,16,256], index: 0, kind: input, shape index: {}]
  %s1 = inlined_call_operand.vmem [shape: f32[2,32,256], index: 1, kind: input, shape index: {}]
  %s2 = inlined_call_operand.vmem [shape: bf16[96,16], index: 2, kind: input, shape index: {}]
  %s3 = inlined_call_operand.vmem [shape: bf16[64,32], index: 3, kind: input, shape index: {}]
  %s4 = inlined_call_operand.vmem [shape: bf16[128,32], index: 4, kind: input, shape index: {}]
  %s5 = inlined_call_operand.vmem [shape: f32[32,32], index: 5, kind: input, shape index: {}]
  %s6 = inlined_call_operand.vmem [shape: f32[224,1], index: 6, kind: input, shape index: {}]
  %s7 = inlined_call_operand.hbm [shape: f32[2,32,256], index: 7, kind: output, shape index: {}]
  %s8 = sld [smem:[#allocation0]]
  $region61: #{tpu_custom_call.1} parent=0
    _
  %s10 = ssub.s32 1, %s8
  %s11 = scalar_select 0, %s10, %s8
  $region1: #{tpu_custom_call.1} parent=0
    #allocation2 [shape = 'u8[65536]{0}', space=vmem, size = 0x10000, scoped, tag = 'output window, operand 0']
    #allocation3 [shape = 's32[2]{0}', space=sflag, size = 0x8, scoped, tag = 'scoped memory for tpu_custom_call.1']
    %12 = vsyncpa [#allocation3], 0
    %s13 = scalar_lea.sflag [#allocation3], 1
    %14 = vsyncpa %s13, 0
    loop: start=0, step=1, limit=4
    $region2: #{tpu_custom_call.1} parent=1 // loop_pre_header
      _
    $region3: #{tpu_custom_call.1} parent=1 // loop_header
      %s16 = sphi 0, %s20
      %p17 = scmp.ge.s32.totalorder %s16, 4
      %s26 = sphi 0, %s28
      %s29 = sphi 0, %s26
      %s30 = sphi 0, %s29
      %s46 = sphi 0, %s30
      %s52 = sphi 0, %s54
      %s55 = sphi 0, %s52
      %s56 = sphi 0, %s55
      %s72 = sphi 0, %s56
      %s76 = sphi 0, %s76
      %s78 = sphi 0, %s76
      %s79 = sphi 0, %s78
      %s93 = sphi 0, %s79
      %s97 = sphi 0, %s97
      %s99 = sphi 0, %s97
      %s100 = sphi 0, %s99
      %s114 = sphi 0, %s100
      %s118 = sphi 0, %s118
      %s120 = sphi 0, %s118
      %s121 = sphi 0, %s120
      %s135 = sphi 0, %s121
      %s139 = sphi 0, %s139
      %s141 = sphi 0, %s139
      %s142 = sphi 0, %s141
      %s156 = sphi 0, %s142
      %s160 = sphi 0, %s160
      %s162 = sphi 0, %s160
      %s163 = sphi 0, %s162
      %s177 = sphi 0, %s163
      %s183 = sphi 0, %s185
      %s186 = sphi 0, %s183
      %s187 = sphi 0, %s186
      %s203 = sphi 0, %s187
    $region4: #{tpu_custom_call.1} parent=1 // loop_header_branch
      %19 = sbr.rel (%p17) target = $region8
    $region5: #{tpu_custom_call.1} parent=1 // loop_body
      %s21 = ssub.s32 %s16, 1
      %s22 = ssub.s32 %s16, 2
      %s23 = sadd.s32 %s16, 1
      %s24 = ssub.s32 %s16, %s23
      %p25 = scmp.eq.s32.totalorder %s24, 0
      %s27 = sadd.s32 %s26, 1
      %s28 = scalar_select %p25, %s26, %s27
      %p31 = pneg %p25
      %p32 = scmp.eq.s32.totalorder %s16, 1
      %p33 = por %p31, %p32
      %p34 = scmp.ne.s32.totalorder %s26, %s29
      %p35 = scmp.eq.s32.totalorder %s16, 0
      %p36 = por %p34, %p35
      %p37 = scmp.ne.s32.totalorder %s26, %s29
      %p38 = scmp.eq.s32.totalorder %s21, 1
      %p39 = por %p37, %p38
      %p40 = scmp.ne.s32.totalorder %s29, %s30
      %p41 = scmp.eq.s32.totalorder %s21, 0
      %p42 = por %p40, %p41
      %p43 = scmp.ne.s32.totalorder %s29, %s30
      %p44 = scmp.eq.s32.totalorder %s22, 1
      %p45 = por %p43, %p44
      %p47 = scmp.ne.s32.totalorder %s30, %s46
      %p48 = scmp.eq.s32.totalorder %s22, 0
      %p49 = por %p47, %p48
      %s50 = ssub.s32 %s16, %s23
      %p51 = scmp.eq.s32.totalorder %s50, 0
      %s53 = sadd.s32 %s52, 1
      %s54 = scalar_select %p51, %s52, %s53
      %p57 = pneg %p51
      %p58 = scmp.eq.s32.totalorder %s16, 1
      %p59 = por %p57, %p58
      %p60 = scmp.ne.s32.totalorder %s52, %s55
      %p61 = scmp.eq.s32.totalorder %s16, 0
      %p62 = por %p60, %p61
      %p63 = scmp.ne.s32.totalorder %s52, %s55
      %p64 = scmp.eq.s32.totalorder %s21, 1
      %p65 = por %p63, %p64
      %p66 = scmp.ne.s32.totalorder %s55, %s56
      %p67 = scmp.eq.s32.totalorder %s21, 0
      %p68 = por %p66, %p67
      %p69 = scmp.ne.s32.totalorder %s55, %s56
      %p70 = scmp.eq.s32.totalorder %s22, 1
      %p71 = por %p69, %p70
      %p73 = scmp.ne.s32.totalorder %s56, %s72
      %p74 = scmp.eq.s32.totalorder %s22, 0
      %p75 = por %p73, %p74
      %s77 = sadd.s32 %s76, 1
      %p80 = scmp.eq.s32.totalorder %s16, 1
      %p81 = scmp.ne.s32.totalorder %s76, %s78
      %p82 = scmp.eq.s32.totalorder %s16, 0
      %p83 = por %p81, %p82
      %p84 = scmp.ne.s32.totalorder %s76, %s78
      %p85 = scmp.eq.s32.totalorder %s21, 1
      %p86 = por %p84, %p85
      %p87 = scmp.ne.s32.totalorder %s78, %s79
      %p88 = scmp.eq.s32.totalorder %s21, 0
      %p89 = por %p87, %p88
      %p90 = scmp.ne.s32.totalorder %s78, %s79
      %p91 = scmp.eq.s32.totalorder %s22, 1
      %p92 = por %p90, %p91
      %p94 = scmp.ne.s32.totalorder %s79, %s93
      %p95 = scmp.eq.s32.totalorder %s22, 0
      %p96 = por %p94, %p95
      %s98 = sadd.s32 %s97, 1
      %p101 = scmp.eq.s32.totalorder %s16, 1
      %p102 = scmp.ne.s32.totalorder %s97, %s99
      %p103 = scmp.eq.s32.totalorder %s16, 0
      %p104 = por %p102, %p103
      %p105 = scmp.ne.s32.totalorder %s97, %s99
      %p106 = scmp.eq.s32.totalorder %s21, 1
      %p107 = por %p105, %p106
      %p108 = scmp.ne.s32.totalorder %s99, %s100
      %p109 = scmp.eq.s32.totalorder %s21, 0
      %p110 = por %p108, %p109
      %p111 = scmp.ne.s32.totalorder %s99, %s100
      %p112 = scmp.eq.s32.totalorder %s22, 1
      %p113 = por %p111, %p112
      %p115 = scmp.ne.s32.totalorder %s100, %s114
      %p116 = scmp.eq.s32.totalorder %s22, 0
      %p117 = por %p115, %p116
      %s119 = sadd.s32 %s118, 1
      %p122 = scmp.eq.s32.totalorder %s16, 1
      %p123 = scmp.ne.s32.totalorder %s118, %s120
      %p124 = scmp.eq.s32.totalorder %s16, 0
      %p125 = por %p123, %p124
      %p126 = scmp.ne.s32.totalorder %s118, %s120
      %p127 = scmp.eq.s32.totalorder %s21, 1
      %p128 = por %p126, %p127
      %p129 = scmp.ne.s32.totalorder %s120, %s121
      %p130 = scmp.eq.s32.totalorder %s21, 0
      %p131 = por %p129, %p130
      %p132 = scmp.ne.s32.totalorder %s120, %s121
      %p133 = scmp.eq.s32.totalorder %s22, 1
      %p134 = por %p132, %p133
      %p136 = scmp.ne.s32.totalorder %s121, %s135
      %p137 = scmp.eq.s32.totalorder %s22, 0
      %p138 = por %p136, %p137
      %s140 = sadd.s32 %s139, 1
      %p143 = scmp.eq.s32.totalorder %s16, 1
      %p144 = scmp.ne.s32.totalorder %s139, %s141
      %p145 = scmp.eq.s32.totalorder %s16, 0
      %p146 = por %p144, %p145
      %p147 = scmp.ne.s32.totalorder %s139, %s141
      %p148 = scmp.eq.s32.totalorder %s21, 1
      %p149 = por %p147, %p148
      %p150 = scmp.ne.s32.totalorder %s141, %s142
      %p151 = scmp.eq.s32.totalorder %s21, 0
      %p152 = por %p150, %p151
      %p153 = scmp.ne.s32.totalorder %s141, %s142
      %p154 = scmp.eq.s32.totalorder %s22, 1
      %p155 = por %p153, %p154
      %p157 = scmp.ne.s32.totalorder %s142, %s156
      %p158 = scmp.eq.s32.totalorder %s22, 0
      %p159 = por %p157, %p158
      %s161 = sadd.s32 %s160, 1
      %p164 = scmp.eq.s32.totalorder %s16, 1
      %p165 = scmp.ne.s32.totalorder %s160, %s162
      %p166 = scmp.eq.s32.totalorder %s16, 0
      %p167 = por %p165, %p166
      %p168 = scmp.ne.s32.totalorder %s160, %s162
      %p169 = scmp.eq.s32.totalorder %s21, 1
      %p170 = por %p168, %p169
      %p171 = scmp.ne.s32.totalorder %s162, %s163
      %p172 = scmp.eq.s32.totalorder %s21, 0
      %p173 = por %p171, %p172
      %p174 = scmp.ne.s32.totalorder %s162, %s163
      %p175 = scmp.eq.s32.totalorder %s22, 1
      %p176 = por %p174, %p175
      %p178 = scmp.ne.s32.totalorder %s163, %s177
      %p179 = scmp.eq.s32.totalorder %s22, 0
      %p180 = por %p178, %p179
      %s181 = ssub.s32 %s16, %s23
      %p182 = scmp.eq.s32.totalorder %s181, 0
      %s184 = sadd.s32 %s183, 1
      %s185 = scalar_select %p182, %s183, %s184
      %p188 = pneg %p182
      %p189 = scmp.eq.s32.totalorder %s16, 1
      %p190 = por %p188, %p189
      %p191 = scmp.ne.s32.totalorder %s183, %s186
      %p192 = scmp.eq.s32.totalorder %s16, 0
      %p193 = por %p191, %p192
      %p194 = scmp.ne.s32.totalorder %s183, %s186
      %p195 = scmp.eq.s32.totalorder %s21, 1
      %p196 = por %p194, %p195
      %p197 = scmp.ne.s32.totalorder %s186, %s187
      %p198 = scmp.eq.s32.totalorder %s21, 0
      %p199 = por %p197, %p198
      %p200 = scmp.ne.s32.totalorder %s186, %s187
      %p201 = scmp.eq.s32.totalorder %s22, 1
      %p202 = por %p200, %p201
      %p204 = scmp.ne.s32.totalorder %s187, %s203
      %p205 = scmp.eq.s32.totalorder %s22, 0
      %p206 = por %p204, %p205
      %p207 = scmp.le.s32.totalorder 1, %s16
      %p208 = scmp.lt.s32.totalorder %s16, 3
      %p209 = pnand %p207, %p208
      %p210 = pneg %p209
      // Predicated region
      $region9: #{tpu_custom_call.1} parent=5 // pred_check
        _
      $region10: #{tpu_custom_call.1} parent=5 // pred_check_branch
        %212 = sbr.rel (%p209) target = $region12
      $region11: #{tpu_custom_call.1} parent=5 // pred_region
        %s213 = ssub.s32 %s16, 1
        // Predicated region
        $region13: #{tpu_custom_call.1} parent=11 // pred_check
          %p214 = pneg %p89
        $region14: #{tpu_custom_call.1} parent=11 // pred_check_branch
          %216 = sbr.rel (%p214) target = $region16
        $region15: #{tpu_custom_call.1} parent=11 // pred_region
          _
        $region16: #{tpu_custom_call.1} parent=11 // pred_fallthru
          _
        // Predicated region
        $region17: #{tpu_custom_call.1} parent=11 // pred_check
          %p217 = pneg %p110
        $region18: #{tpu_custom_call.1} parent=11 // pred_check_branch
          %219 = sbr.rel (%p217) target = $region20
        $region19: #{tpu_custom_call.1} parent=11 // pred_region
          _
        $region20: #{tpu_custom_call.1} parent=11 // pred_fallthru
          _
        // Predicated region
        $region21: #{tpu_custom_call.1} parent=11 // pred_check
          %p220 = pneg %p131
        $region22: #{tpu_custom_call.1} parent=11 // pred_check_branch
          %222 = sbr.rel (%p220) target = $region24
        $region23: #{tpu_custom_call.1} parent=11 // pred_region
          _
        $region24: #{tpu_custom_call.1} parent=11 // pred_fallthru
          _
        // Predicated region
        $region25: #{tpu_custom_call.1} parent=11 // pred_check
          %p223 = pneg %p152
        $region26: #{tpu_custom_call.1} parent=11 // pred_check_branch
          %225 = sbr.rel (%p223) target = $region28
        $region27: #{tpu_custom_call.1} parent=11 // pred_region
          _
        $region28: #{tpu_custom_call.1} parent=11 // pred_fallthru
          _
        // Predicated region
        $region29: #{tpu_custom_call.1} parent=11 // pred_check
          %p226 = pneg %p173
        $region30: #{tpu_custom_call.1} parent=11 // pred_check_branch
          %228 = sbr.rel (%p226) target = $region32
        $region31: #{tpu_custom_call.1} parent=11 // pred_region
          _
        $region32: #{tpu_custom_call.1} parent=11 // pred_fallthru
          _
      $region12: #{tpu_custom_call.1} parent=5 // pred_fallthru
        _
      %p229 = scmp.lt.s32.totalorder %s16, 2
      // Predicated region
      $region33: #{tpu_custom_call.1} parent=5 // pred_check
        %p230 = pneg %p229
      $region34: #{tpu_custom_call.1} parent=5 // pred_check_branch
        %232 = sbr.rel (%p230) target = $region36
      $region35: #{tpu_custom_call.1} parent=5 // pred_region
        // Predicated region
        $region37: #{tpu_custom_call.1} parent=35 // pred_check
          %p233 = pneg %p36
        $region38: #{tpu_custom_call.1} parent=35 // pred_check_branch
          %235 = sbr.rel (%p233) target = $region40
        $region39: #{tpu_custom_call.1} parent=35 // pred_region
          %p236 = scmp.lt.s32.totalorder %s16, 1
          %s237 = scalar_select %p236, %s16, 1
          %s238 = smul.addr %s237, 4
          %s239 = smul.addr %s238, 8
          %s240 = scalar_lea.vmem %s0, %s239
        $region40: #{tpu_custom_call.1} parent=35 // pred_fallthru
          _
        // Predicated region
        $region41: #{tpu_custom_call.1} parent=35 // pred_check
          %p241 = pneg %p62
        $region42: #{tpu_custom_call.1} parent=35 // pred_check_branch
          %243 = sbr.rel (%p241) target = $region44
        $region43: #{tpu_custom_call.1} parent=35 // pred_region
          %p244 = scmp.lt.s32.totalorder %s16, 1
          %s245 = scalar_select %p244, %s16, 1
          %s246 = smul.addr %s245, 8
          %s247 = smul.addr %s246, 8
          %s248 = scalar_lea.vmem %s1, %s247
        $region44: #{tpu_custom_call.1} parent=35 // pred_fallthru
          _
      $region36: #{tpu_custom_call.1} parent=5 // pred_fallthru
        _
      %p249 = scmp.le.s32.totalorder 1, %s16
      %p250 = scmp.lt.s32.totalorder %s16, 3
      %p251 = pnand %p249, %p250
      %p252 = pneg %p251
      // Predicated region
      $region45: #{tpu_custom_call.1} parent=5 // pred_check
        _
      $region46: #{tpu_custom_call.1} parent=5 // pred_check_branch
        %254 = sbr.rel (%p251) target = $region48
      $region47: #{tpu_custom_call.1} parent=5 // pred_region
        %s255 = ssub.s32 %s16, 1
        %p256 = scmp.lt.s32.totalorder %s21, 1
        %s257 = scalar_select %p256, %s21, 1
        %s258 = smul.addr %s257, 4
        %s259 = smul.addr %s258, 8
        %s260 = scalar_lea.vmem %s0, %s259
        %p261 = pneg %p42
        %p262 = pneg %p39
        %p263 = scmp.lt.s32.totalorder %s21, 1
        %s264 = scalar_select %p263, %s21, 1
        %s265 = smul.addr %s264, 8
        %s266 = smul.addr %s265, 8
        %s267 = scalar_lea.vmem %s1, %s266
        %p268 = pneg %p68
        %p269 = pneg %p65
        %p270 = pneg %p89
        %p271 = pneg %p86
        %p272 = pneg %p110
        %p273 = pneg %p107
        %p274 = pneg %p131
        %p275 = pneg %p128
        %p276 = pneg %p152
        %p277 = pneg %p149
        %p278 = pneg %p173
        %p279 = pneg %p170
        %p280 = pneg %p199
        %p281 = pneg %p196
        %s282 = sand.u32 %s186, 1
        %s283 = scalar_lea.sflag [#allocation3], %s282
        %s284 = sand.u32 %s186, 1
        %s285 = smul.addr %s284, 64
        %s286 = scalar_lea.vmem [#allocation2], %s285
        %p287 = scmp.lt.s32.totalorder %s21, 1
        %s288 = scalar_select %p287, %s21, 1
        %s289 = smul.addr %s288, 4
        %s290 = smul.addr %s289, 8
        %s291 = scalar_lea.vmem %s0, %s290
        %p292 = scmp.lt.s32.totalorder %s21, 1
        %s293 = scalar_select %p292, %s21, 1
        %s294 = smul.addr %s293, 8
        %s295 = smul.addr %s294, 8
        %s296 = scalar_lea.vmem %s1, %s295
        %v298 = vld [vmem:[%s291] sm:$0xff]
        %v299 = vld [vmem:[%s291 + $0x8] sm:$0xff]
        %v300 = vld [vmem:[%s291 + $0x10] sm:$0xff]
        %v301 = vld [vmem:[%s291 + $0x18] sm:$0xff]
        %v302 = vld [vmem:[%s296] sm:$0xff]
        %v303 = vld [vmem:[%s296 + $0x8] sm:$0xff]
        %v304 = vld [vmem:[%s296 + $0x10] sm:$0xff]
        %v305 = vld [vmem:[%s296 + $0x18] sm:$0xff]
        %v306 = vld [vmem:[%s296 + $0x20] sm:$0xff]
        %v307 = vld [vmem:[%s296 + $0x28] sm:$0xff]
        %v308 = vld [vmem:[%s296 + $0x30] sm:$0xff]
        %v309 = vld [vmem:[%s296 + $0x38] sm:$0xff]
        %v310 = vadd.f32 %v302, %v303
        %311 = vadd.xlane.f32.xlu0 %v310
        %v312 = vpop.xlane.xlu0 %311
        %v313 = vadd.f32 %v304, %v305
        %314 = vadd.xlane.f32.xlu0 %v313
        %v315 = vpop.xlane.xlu0 %314
        %v316 = vadd.f32 %v306, %v307
        %317 = vadd.xlane.f32.xlu0 %v316
        %v318 = vpop.xlane.xlu0 %317
        %v319 = vadd.f32 %v308, %v309
        %320 = vadd.xlane.f32.xlu0 %v319
        %v321 = vpop.xlane.xlu0 %320
        %v322 = vrcp.pop 256.0
        %v323 = vmul.f32 %v312, %v322
        %v324 = vmul.f32 %v315, %v322
        %v325 = vmul.f32 %v318, %v322
        %v326 = vmul.f32 %v321, %v322
        %v327 = vmax.f32 %v302, %v303
        %328 = vmax.xlane.f32.xlu0 %v327
        %v329 = vpop.xlane.xlu0 %328
        %v330 = vmax.f32 %v304, %v305
        %331 = vmax.xlane.f32.xlu0 %v330
        %v332 = vpop.xlane.xlu0 %331
        %v333 = vmax.f32 %v306, %v307
        %334 = vmax.xlane.f32.xlu0 %v333
        %v335 = vpop.xlane.xlu0 %334
        %v336 = vmax.f32 %v308, %v309
        %337 = vmax.xlane.f32.xlu0 %v336
        %v338 = vpop.xlane.xlu0 %337
        %v339 = vadd.f32 %v323, %v329
        %v340 = vadd.f32 %v324, %v332
        %v341 = vadd.f32 %v325, %v335
        %v342 = vadd.f32 %v326, %v338
        %v343 = vld [vmem:[%s5] sm:$0xff]
        %v344 = vld [vmem:[%s5 + $0x8] sm:$0xff]
        %v345 = vld [vmem:[%s5 + $0x10] sm:$0xff]
        %v346 = vld [vmem:[%s5 + $0x18] sm:$0xff]
        %vm347 = vcmask 261120
        %v349 = vsel %vm347, %v343, 0
        %v352 = vsel %vm347, %v344, 0
        %v355 = vsel %vm347, %v345, 0
        %v358 = vsel %vm347, %v346, 0
        %360 = vmatprep.subr.mxu0 0.0
        %361 = vmatpush1.msra.mxu0 0.0
        %362 = vmatprep.subr.mxu0 0.0
        %363 = vmatpush1.msra.mxu0 0.0
        %364 = vmatprep.subr.mxu0 0.0
        %365 = vmatpush1.msra.mxu0 0.0
        %366 = vmatprep.subr.mxu0 0.0
        %367 = vmatpush1.msra.mxu0 0.0
        %368 = vmatprep.subr.mxu0 0.0
        %369 = vmatpush1.msra.mxu0 0.0
        %370 = vmatprep.subr.mxu0 0.0
        %371 = vmatpush1.msra.mxu0 0.0
        %372 = vmatprep.subr.mxu0 0.0
        %373 = vmatpush1.msra.mxu0 0.0
        %374 = vmatprep.subr.mxu0 0.0
        %375 = vmatpush1.msra.mxu0 0.0
        %376 = vmatprep.subr.mxu0 0.0
        %377 = vmatpush1.msra.mxu0 0.0
        %378 = vmatprep.subr.mxu0 0.0
        %379 = vmatpush1.msra.mxu0 0.0
        %380 = vmatprep.subr.mxu0 0.0
        %381 = vmatpush1.msra.mxu0 0.0
        %382 = vmatprep.subr.mxu0 0.0
        %383 = vmatpush1.msra.mxu0 0.0
        %384 = vmatprep.subr.mxu0 0.0
        %385 = vmatpush1.msra.mxu0 %v342
        %386 = vmatprep.subr.mxu0 0.0
        %387 = vmatpush1.msra.mxu0 %v341
        %388 = vmatprep.subr.mxu0 0.0
        %389 = vmatpush1.msra.mxu0 %v340
        %390 = vmatprep.subr.mxu0 0.0
        %391 = vmatpush1.msra.mxu0 %v339
        %392 = vmatprep.subr.mxu0 0.0
        %393 = vmatpush2.msra.mxu0 0.0
        %394 = vmatprep.subr.mxu0 0.0
        %395 = vmatpush2.msra.mxu0 0.0
        %396 = vmatprep.subr.mxu0 0.0
        %397 = vmatpush2.msra.mxu0 0.0
        %398 = vmatprep.subr.mxu0 0.0
        %399 = vmatpush2.msra.mxu0 0.0
        %400 = vmatprep.subr.mxu0 0.0
        %401 = vmatpush2.msra.mxu0 0.0
        %402 = vmatprep.subr.mxu0 0.0
        %403 = vmatpush2.msra.mxu0 0.0
        %404 = vmatprep.subr.mxu0 0.0
        %405 = vmatpush2.msra.mxu0 0.0
        %406 = vmatprep.subr.mxu0 0.0
        %407 = vmatpush2.msra.mxu0 0.0
        %408 = vmatprep.subr.mxu0 0.0
        %409 = vmatpush2.msra.mxu0 0.0
        %410 = vmatprep.subr.mxu0 0.0
        %411 = vmatpush2.msra.mxu0 0.0
        %412 = vmatprep.subr.mxu0 0.0
        %413 = vmatpush2.msra.mxu0 0.0
        %414 = vmatprep.subr.mxu0 0.0
        %415 = vmatpush2.msra.mxu0 0.0
        %416 = vmatprep.subr.mxu0 0.0
        %417 = vmatpush2.msra.mxu0 0.0
        %418 = vmatprep.subr.mxu0 0.0
        %419 = vmatpush2.msra.mxu0 0.0
        %420 = vmatprep.subr.mxu0 0.0
        %421 = vmatpush2.msra.mxu0 0.0
        %422 = vmatprep.subr.mxu0 0.0
        %423 = vmatpush2.msra.mxu0 0.0
        %424 = vmatprep.mubr.f32.mxu0 0.0
        %425 = vmatmul.mubr.f32.gmra.mxu0 %v349
        %v426 = vpop.f32.mrf.mxu0
        %v427 = vadd.f32 0.0, %v426
        %v428 = vpop.f32.mrf.mxu0
        %429 = vmatprep.mubr.f32.mxu0 0.0
        %430 = vmatmul.mubr.f32.gmra.mxu0 %v352
        %v431 = vpop.f32.mrf.mxu0
        %v432 = vadd.f32 0.0, %v431
        %v433 = vpop.f32.mrf.mxu0
        %434 = vmatprep.mubr.f32.mxu0 0.0
        %435 = vmatmul.mubr.f32.gmra.mxu0 %v355
        %v436 = vpop.f32.mrf.mxu0
        %v437 = vadd.f32 0.0, %v436
        %v438 = vpop.f32.mrf.mxu0
        %439 = vmatprep.mubr.f32.mxu0 0.0
        %440 = vmatmul.mubr.f32.gmra.mxu0 %v358
        %v441 = vpop.f32.mrf.mxu0
        %v442 = vadd.f32 0.0, %v441
        %v443 = vpop.f32.mrf.mxu0
        %444 = vdwg.mxu0
        %v445 = vxor.u32 %v427, 2147483648
        %v446 = vxor.u32 %v432, 2147483648
        %v447 = vxor.u32 %v437, 2147483648
        %v448 = vxor.u32 %v442, 2147483648
        %v449 = vmul.f32 %v445, 1.442695
        %v450 = vpow.pop %v449
        %v451 = vmul.f32 %v446, 1.442695
        %v452 = vpow.pop %v451
        %v453 = vmul.f32 %v447, 1.442695
        %v454 = vpow.pop %v453
        %v455 = vmul.f32 %v448, 1.442695
        %v456 = vpow.pop %v455
        %v457 = vadd.f32 %v450, 1.0
        %v458 = vadd.f32 %v452, 1.0
        %v459 = vadd.f32 %v454, 1.0
        %v460 = vadd.f32 %v456, 1.0
        %v461 = vrcp.pop %v457
        %v462 = vmul.f32 1.0, %v461
        %v463 = vrcp.pop %v458
        %v464 = vmul.f32 1.0, %v463
        %v465 = vrcp.pop %v459
        %v466 = vmul.f32 1.0, %v465
        %v467 = vrcp.pop %v460
        %v468 = vmul.f32 1.0, %v467
        %v469 = vld [vmem:[%s3] sm:$0xf]
        %v470 = vld [vmem:[%s3 + $0x4] sm:$0xf]
        %v471 = vld [vmem:[%s3 + $0x8] sm:$0xf]
        %v472 = vld [vmem:[%s3 + $0xc] sm:$0xf]
        %v473 = vld [vmem:[%s3 + $0x10] sm:$0xf]
        %v474 = vld [vmem:[%s3 + $0x14] sm:$0xf]
        %v475 = vld [vmem:[%s3 + $0x18] sm:$0xf]
        %v476 = vld [vmem:[%s3 + $0x1c] sm:$0xf]
        %v477 = vpack.c.bf16 %v304, %v302
        %v478 = vpack.c.bf16 %v305, %v303
        %v479 = vpack.c.bf16 %v308, %v306
        %v480 = vpack.c.bf16 %v309, %v307
        %v489 = vunpack.c.l.b16 %v469
        %v490 = vunpack.c.l.b16 %v470
        %v491 = vunpack.c.l.b16 %v471
        %v492 = vunpack.c.l.b16 %v472
        %v493 = vunpack.c.l.b16 %v473
        %v494 = vunpack.c.l.b16 %v474
        %v495 = vunpack.c.l.b16 %v475
        %v496 = vunpack.c.l.b16 %v476
        %v497 = vpack.c.b16 %v490, %v489
        %v498 = vpack.c.b16 %v492, %v491
        %v499 = vpack.c.b16 %v494, %v493
        %v500 = vpack.c.b16 %v496, %v495
        %v502 = vsel %vm347, %v497, 0
        %v505 = vsel %vm347, %v498, 0
        %v508 = vsel %vm347, %v499, 0
        %v511 = vsel %vm347, %v500, 0
        %513 = vmatprep.subr.bf16.mxu0 0
        %514 = vmatpush1.bf16.msra.mxu0 0
        %515 = vmatprep.subr.bf16.mxu0 0
        %516 = vmatpush1.bf16.msra.mxu0 0
        %517 = vmatprep.subr.bf16.mxu0 0
        %518 = vmatpush1.bf16.msra.mxu0 0
        %519 = vmatprep.subr.bf16.mxu0 0
        %520 = vmatpush1.bf16.msra.mxu0 0
        %521 = vmatprep.subr.bf16.mxu0 0
        %522 = vmatpush1.bf16.msra.mxu0 0
        %523 = vmatprep.subr.bf16.mxu0 0
        %524 = vmatpush1.bf16.msra.mxu0 0
        %525 = vmatprep.subr.bf16.mxu0 %v480
        %526 = vmatpush1.bf16.msra.mxu0 %v479
        %527 = vmatprep.subr.bf16.mxu0 %v478
        %528 = vmatpush1.bf16.msra.mxu0 %v477
        %529 = vmatprep.subr.bf16.mxu0 0
        %530 = vmatpush2.bf16.msra.mxu0 0
        %531 = vmatprep.subr.bf16.mxu0 0
        %532 = vmatpush2.bf16.msra.mxu0 0
        %533 = vmatprep.subr.bf16.mxu0 0
        %534 = vmatpush2.bf16.msra.mxu0 0
        %535 = vmatprep.subr.bf16.mxu0 0
        %536 = vmatpush2.bf16.msra.mxu0 0
        %537 = vmatprep.subr.bf16.mxu0 0
        %538 = vmatpush2.bf16.msra.mxu0 0
        %539 = vmatprep.subr.bf16.mxu0 0
        %540 = vmatpush2.bf16.msra.mxu0 0
        %541 = vmatprep.subr.bf16.mxu0 0
        %542 = vmatpush2.bf16.msra.mxu0 0
        %543 = vmatprep.subr.bf16.mxu0 0
        %544 = vmatpush2.bf16.msra.mxu0 0
        %545 = vmatprep.mubr.bf16.mxu0 0
        %546 = vmatmul.mubr.bf16.gmra.mxu0 %v502
        %v547 = vpop.f32.mrf.mxu0
        %v548 = vadd.f32 0.0, %v547
        %v549 = vpop.f32.mrf.mxu0
        %v550 = vadd.f32 0.0, %v549
        %v551 = vpop.f32.mrf.mxu0
        %v552 = vadd.f32 0.0, %v551
        %v553 = vpop.f32.mrf.mxu0
        %v554 = vadd.f32 0.0, %v553
        %555 = vmatprep.mubr.bf16.mxu0 0
        %556 = vmatmul.mubr.bf16.gmra.mxu0 %v505
        %v557 = vpop.f32.mrf.mxu0
        %v558 = vadd.f32 0.0, %v557
        %v559 = vpop.f32.mrf.mxu0
        %v560 = vadd.f32 0.0, %v559
        %v561 = vpop.f32.mrf.mxu0
        %v562 = vadd.f32 0.0, %v561
        %v563 = vpop.f32.mrf.mxu0
        %v564 = vadd.f32 0.0, %v563
        %565 = vmatprep.mubr.bf16.mxu0 0
        %566 = vmatmul.mubr.bf16.gmra.mxu0 %v508
        %v567 = vpop.f32.mrf.mxu0
        %v568 = vadd.f32 0.0, %v567
        %v569 = vpop.f32.mrf.mxu0
        %v570 = vadd.f32 0.0, %v569
        %v571 = vpop.f32.mrf.mxu0
        %v572 = vadd.f32 0.0, %v571
        %v573 = vpop.f32.mrf.mxu0
        %v574 = vadd.f32 0.0, %v573
        %575 = vmatprep.mubr.bf16.mxu0 0
        %576 = vmatmul.mubr.bf16.gmra.mxu0 %v511
        %v577 = vpop.f32.mrf.mxu0
        %v578 = vadd.f32 0.0, %v577
        %v579 = vpop.f32.mrf.mxu0
        %v580 = vadd.f32 0.0, %v579
        %v581 = vpop.f32.mrf.mxu0
        %v582 = vadd.f32 0.0, %v581
        %v583 = vpop.f32.mrf.mxu0
        %v584 = vadd.f32 0.0, %v583
        %585 = vdwg.mxu0
        %v586 = vld [vmem:[%s6 + $0x40] sm:$0xff]
        %v587 = vld [vmem:[%s6 + $0x48] sm:$0xff]
        %v588 = vld [vmem:[%s6 + $0x50] sm:$0xff]
        %v589 = vld [vmem:[%s6 + $0x58] sm:$0xff]
        %591 = vset.pattern.permute.xlu0 0
        %592 = vperm.xlu0 %591, %v586
        %v593 = vpop.permute.xlu0 %592
        %596 = vset.pattern.permute.xlu0 0
        %597 = vperm.xlu0 %596, %v587
        %v598 = vpop.permute.xlu0 %597
        %601 = vset.pattern.permute.xlu0 0
        %602 = vperm.xlu0 %601, %v588
        %v603 = vpop.permute.xlu0 %602
        %606 = vset.pattern.permute.xlu0 0
        %607 = vperm.xlu0 %606, %v589
        %v608 = vpop.permute.xlu0 %607
        %v610 = vadd.f32 %v548, %v593
        %v611 = vadd.f32 %v550, %v593
        %v612 = vadd.f32 %v552, %v598
        %v613 = vadd.f32 %v554, %v598
        %v614 = vadd.f32 %v558, %v603
        %v615 = vadd.f32 %v560, %v603
        %v616 = vadd.f32 %v562, %v608
        %v617 = vadd.f32 %v564, %v608
        %v618 = vmax.f32 %v610, 0.0
        %v619 = vmax.f32 %v611, 0.0
        %v620 = vmax.f32 %v612, 0.0
        %v621 = vmax.f32 %v613, 0.0
        %v622 = vmax.f32 %v614, 0.0
        %v623 = vmax.f32 %v615, 0.0
        %v624 = vmax.f32 %v616, 0.0
        %v625 = vmax.f32 %v617, 0.0
        %v626 = vld [vmem:[%s2] sm:$0xf]
        %v627 = vld [vmem:[%s2 + $0x4] sm:$0xf]
        %v628 = vld [vmem:[%s2 + $0x8] sm:$0xf]
        %v629 = vld [vmem:[%s2 + $0xc] sm:$0xf]
        %v630 = vld [vmem:[%s2 + $0x10] sm:$0xf]
        %v631 = vld [vmem:[%s2 + $0x14] sm:$0xf]
        %v632 = vld [vmem:[%s2 + $0x18] sm:$0xf]
        %v633 = vld [vmem:[%s2 + $0x1c] sm:$0xf]
        %v634 = vld [vmem:[%s2 + $0x20] sm:$0xf]
        %v635 = vld [vmem:[%s2 + $0x24] sm:$0xf]
        %v636 = vld [vmem:[%s2 + $0x28] sm:$0xf]
        %v637 = vld [vmem:[%s2 + $0x2c] sm:$0xf]
        %v638 = vpack.c.bf16 %v300, %v298
        %v639 = vpack.c.bf16 %v301, %v299
        %v652 = vunpack.c.l.b16 %v626
        %v653 = vunpack.c.l.b16 %v627
        %v654 = vunpack.c.l.b16 %v628
        %v655 = vunpack.c.l.b16 %v629
        %v656 = vunpack.c.l.b16 %v630
        %v657 = vunpack.c.l.b16 %v631
        %v658 = vunpack.c.l.b16 %v632
        %v659 = vunpack.c.l.b16 %v633
        %v660 = vunpack.c.l.b16 %v634
        %v661 = vunpack.c.l.b16 %v635
        %v662 = vunpack.c.l.b16 %v636
        %v663 = vunpack.c.l.b16 %v637
        %v664 = vpack.c.b16 %v653, %v652
        %v665 = vpack.c.b16 %v655, %v654
        %v666 = vpack.c.b16 %v657, %v656
        %v667 = vpack.c.b16 %v659, %v658
        %v668 = vpack.c.b16 %v661, %v660
        %v669 = vpack.c.b16 %v663, %v662
        %vm670 = vcmask 130048
        %v672 = vsel %vm670, %v664, 0
        %v675 = vsel %vm670, %v665, 0
        %v678 = vsel %vm670, %v666, 0
        %v681 = vsel %vm670, %v667, 0
        %v684 = vsel %vm670, %v668, 0
        %v687 = vsel %vm670, %v669, 0
        %689 = vmatprep.subr.bf16.mxu0 0
        %690 = vmatpush1.bf16.msra.mxu0 0
        %691 = vmatprep.subr.bf16.mxu0 0
        %692 = vmatpush1.bf16.msra.mxu0 0
        %693 = vmatprep.subr.bf16.mxu0 0
        %694 = vmatpush1.bf16.msra.mxu0 0
        %695 = vmatprep.subr.bf16.mxu0 0
        %696 = vmatpush1.bf16.msra.mxu0 0
        %697 = vmatprep.subr.bf16.mxu0 0
        %698 = vmatpush1.bf16.msra.mxu0 0
        %699 = vmatprep.subr.bf16.mxu0 0
        %700 = vmatpush1.bf16.msra.mxu0 0
        %701 = vmatprep.subr.bf16.mxu0 0
        %702 = vmatpush1.bf16.msra.mxu0 0
        %703 = vmatprep.subr.bf16.mxu0 %v639
        %704 = vmatpush1.bf16.msra.mxu0 %v638
        %705 = vmatprep.subr.bf16.mxu0 0
        %706 = vmatpush2.bf16.msra.mxu0 0
        %707 = vmatprep.subr.bf16.mxu0 0
        %708 = vmatpush2.bf16.msra.mxu0 0
        %709 = vmatprep.subr.bf16.mxu0 0
        %710 = vmatpush2.bf16.msra.mxu0 0
        %711 = vmatprep.subr.bf16.mxu0 0
        %712 = vmatpush2.bf16.msra.mxu0 0
        %713 = vmatprep.subr.bf16.mxu0 0
        %714 = vmatpush2.bf16.msra.mxu0 0
        %715 = vmatprep.subr.bf16.mxu0 0
        %716 = vmatpush2.bf16.msra.mxu0 0
        %717 = vmatprep.subr.bf16.mxu0 0
        %718 = vmatpush2.bf16.msra.mxu0 0
        %719 = vmatprep.subr.bf16.mxu0 0
        %720 = vmatpush2.bf16.msra.mxu0 0
        %721 = vmatprep.mubr.bf16.mxu0 0
        %722 = vmatmul.mubr.bf16.gmra.mxu0 %v672
        %v723 = vpop.f32.mrf.mxu0
        %v724 = vadd.f32 0.0, %v723
        %v725 = vpop.f32.mrf.mxu0
        %v726 = vadd.f32 0.0, %v725
        %v727 = vpop.f32.mrf.mxu0
        %v728 = vadd.f32 0.0, %v727
        %v729 = vpop.f32.mrf.mxu0
        %v730 = vadd.f32 0.0, %v729
        %731 = vmatprep.mubr.bf16.mxu0 0
        %732 = vmatmul.mubr.bf16.gmra.mxu0 %v675
        %v733 = vpop.f32.mrf.mxu0
        %v734 = vadd.f32 0.0, %v733
        %v735 = vpop.f32.mrf.mxu0
        %v736 = vadd.f32 0.0, %v735
        %v737 = vpop.f32.mrf.mxu0
        %v738 = vadd.f32 0.0, %v737
        %v739 = vpop.f32.mrf.mxu0
        %v740 = vadd.f32 0.0, %v739
        %741 = vmatprep.mubr.bf16.mxu0 0
        %742 = vmatmul.mubr.bf16.gmra.mxu0 %v678
        %v743 = vpop.f32.mrf.mxu0
        %v744 = vadd.f32 0.0, %v743
        %v745 = vpop.f32.mrf.mxu0
        %v746 = vadd.f32 0.0, %v745
        %v747 = vpop.f32.mrf.mxu0
        %v748 = vadd.f32 0.0, %v747
        %v749 = vpop.f32.mrf.mxu0
        %v750 = vadd.f32 0.0, %v749
        %751 = vmatprep.mubr.bf16.mxu0 0
        %752 = vmatmul.mubr.bf16.gmra.mxu0 %v681
        %v753 = vpop.f32.mrf.mxu0
        %v754 = vadd.f32 0.0, %v753
        %v755 = vpop.f32.mrf.mxu0
        %v756 = vadd.f32 0.0, %v755
        %v757 = vpop.f32.mrf.mxu0
        %v758 = vadd.f32 0.0, %v757
        %v759 = vpop.f32.mrf.mxu0
        %v760 = vadd.f32 0.0, %v759
        %761 = vmatprep.mubr.bf16.mxu0 0
        %762 = vmatmul.mubr.bf16.gmra.mxu0 %v684
        %v763 = vpop.f32.mrf.mxu0
        %v764 = vadd.f32 0.0, %v763
        %v765 = vpop.f32.mrf.mxu0
        %v766 = vadd.f32 0.0, %v765
        %v767 = vpop.f32.mrf.mxu0
        %v768 = vadd.f32 0.0, %v767
        %v769 = vpop.f32.mrf.mxu0
        %v770 = vadd.f32 0.0, %v769
        %771 = vmatprep.mubr.bf16.mxu0 0
        %772 = vmatmul.mubr.bf16.gmra.mxu0 %v687
        %v773 = vpop.f32.mrf.mxu0
        %v774 = vadd.f32 0.0, %v773
        %v775 = vpop.f32.mrf.mxu0
        %v776 = vadd.f32 0.0, %v775
        %v777 = vpop.f32.mrf.mxu0
        %v778 = vadd.f32 0.0, %v777
        %v779 = vpop.f32.mrf.mxu0
        %v780 = vadd.f32 0.0, %v779
        %781 = vdwg.mxu0
        %v782 = vld [vmem:[%s6] sm:$0xff]
        %v783 = vld [vmem:[%s6 + $0x8] sm:$0xff]
        %v784 = vld [vmem:[%s6 + $0x10] sm:$0xff]
        %v785 = vld [vmem:[%s6 + $0x18] sm:$0xff]
        %787 = vset.pattern.permute.xlu0 0
        %788 = vperm.xlu0 %787, %v782
        %v789 = vpop.permute.xlu0 %788
        %792 = vset.pattern.permute.xlu0 0
        %793 = vperm.xlu0 %792, %v783
        %v794 = vpop.permute.xlu0 %793
        %797 = vset.pattern.permute.xlu0 0
        %798 = vperm.xlu0 %797, %v784
        %v799 = vpop.permute.xlu0 %798
        %802 = vset.pattern.permute.xlu0 0
        %803 = vperm.xlu0 %802, %v785
        %v804 = vpop.permute.xlu0 %803
        %v806 = vadd.f32 %v724, %v789
        %v807 = vadd.f32 %v726, %v789
        %v808 = vadd.f32 %v728, %v794
        %v809 = vadd.f32 %v730, %v794
        %v810 = vadd.f32 %v734, %v799
        %v811 = vadd.f32 %v736, %v799
        %v812 = vadd.f32 %v738, %v804
        %v813 = vadd.f32 %v740, %v804
        %v814 = vmax.f32 %v806, 0.0
        %v815 = vmax.f32 %v807, 0.0
        %v816 = vmax.f32 %v808, 0.0
        %v817 = vmax.f32 %v809, 0.0
        %v818 = vmax.f32 %v810, 0.0
        %v819 = vmax.f32 %v811, 0.0
        %v820 = vmax.f32 %v812, 0.0
        %v821 = vmax.f32 %v813, 0.0
        %v822 = vld [vmem:[%s6 + $0x20] sm:$0xff]
        %v823 = vld [vmem:[%s6 + $0x28] sm:$0xff]
        %v824 = vld [vmem:[%s6 + $0x30] sm:$0xff]
        %v825 = vld [vmem:[%s6 + $0x38] sm:$0xff]
        %827 = vset.pattern.permute.xlu0 0
        %828 = vperm.xlu0 %827, %v822
        %v829 = vpop.permute.xlu0 %828
        %832 = vset.pattern.permute.xlu0 0
        %833 = vperm.xlu0 %832, %v823
        %v834 = vpop.permute.xlu0 %833
        %837 = vset.pattern.permute.xlu0 0
        %838 = vperm.xlu0 %837, %v824
        %v839 = vpop.permute.xlu0 %838
        %842 = vset.pattern.permute.xlu0 0
        %843 = vperm.xlu0 %842, %v825
        %v844 = vpop.permute.xlu0 %843
        %v846 = vadd.f32 %v744, %v829
        %v847 = vadd.f32 %v746, %v829
        %v848 = vadd.f32 %v748, %v834
        %v849 = vadd.f32 %v750, %v834
        %v850 = vadd.f32 %v754, %v839
        %v851 = vadd.f32 %v756, %v839
        %v852 = vadd.f32 %v758, %v844
        %v853 = vadd.f32 %v760, %v844
        %v854 = vmax.f32 %v846, 0.0
        %v855 = vmax.f32 %v847, 0.0
        %v856 = vmax.f32 %v848, 0.0
        %v857 = vmax.f32 %v849, 0.0
        %v858 = vmax.f32 %v850, 0.0
        %v859 = vmax.f32 %v851, 0.0
        %v860 = vmax.f32 %v852, 0.0
        %v861 = vmax.f32 %v853, 0.0
        %v862 = vld [vmem:[%s4] sm:$0xf]
        %v863 = vld [vmem:[%s4 + $0x4] sm:$0xf]
        %v864 = vld [vmem:[%s4 + $0x8] sm:$0xf]
        %v865 = vld [vmem:[%s4 + $0xc] sm:$0xf]
        %v866 = vld [vmem:[%s4 + $0x10] sm:$0xf]
        %v867 = vld [vmem:[%s4 + $0x14] sm:$0xf]
        %v868 = vld [vmem:[%s4 + $0x18] sm:$0xf]
        %v869 = vld [vmem:[%s4 + $0x1c] sm:$0xf]
        %v870 = vld [vmem:[%s4 + $0x20] sm:$0xf]
        %v871 = vld [vmem:[%s4 + $0x24] sm:$0xf]
        %v872 = vld [vmem:[%s4 + $0x28] sm:$0xf]
        %v873 = vld [vmem:[%s4 + $0x2c] sm:$0xf]
        %v874 = vld [vmem:[%s4 + $0x30] sm:$0xf]
        %v875 = vld [vmem:[%s4 + $0x34] sm:$0xf]
        %v876 = vld [vmem:[%s4 + $0x38] sm:$0xf]
        %v877 = vld [vmem:[%s4 + $0x3c] sm:$0xf]
        %879 = vset.pattern.permute.xlu0 0
        %880 = vperm.xlu0 %879, %v462
        %v881 = vpop.permute.xlu0 %880
        %884 = vset.pattern.permute.xlu0 0
        %885 = vperm.xlu0 %884, %v464
        %v886 = vpop.permute.xlu0 %885
        %889 = vset.pattern.permute.xlu0 0
        %890 = vperm.xlu0 %889, %v466
        %v891 = vpop.permute.xlu0 %890
        %894 = vset.pattern.permute.xlu0 0
        %895 = vperm.xlu0 %894, %v468
        %v896 = vpop.permute.xlu0 %895
        %v898 = vmul.f32 %v814, %v881
        %v899 = vmul.f32 %v815, %v881
        %v900 = vmul.f32 %v816, %v886
        %v901 = vmul.f32 %v817, %v886
        %v902 = vmul.f32 %v818, %v891
        %v903 = vmul.f32 %v819, %v891
        %v904 = vmul.f32 %v820, %v896
        %v905 = vmul.f32 %v821, %v896
        %v906 = vpack.c.bf16 %v900, %v898
        %v907 = vpack.c.bf16 %v901, %v899
        %v908 = vpack.c.bf16 %v904, %v902
        %v909 = vpack.c.bf16 %v905, %v903
        %v914 = vunpack.c.l.b16 %v870
        %v915 = vunpack.c.l.b16 %v871
        %v916 = vunpack.c.l.b16 %v872
        %v917 = vunpack.c.l.b16 %v873
        %v918 = vpack.c.b16 %v915, %v914
        %v919 = vpack.c.b16 %v917, %v916
        %v921 = vsel %vm347, %v918, 0
        %v924 = vsel %vm347, %v919, 0
        %926 = vmatprep.subr.bf16.mxu0 0
        %927 = vmatpush1.bf16.msra.mxu0 0
        %928 = vmatprep.subr.bf16.mxu0 0
        %929 = vmatpush1.bf16.msra.mxu0 0
        %930 = vmatprep.subr.bf16.mxu0 0
        %931 = vmatpush1.bf16.msra.mxu0 0
        %932 = vmatprep.subr.bf16.mxu0 0
        %933 = vmatpush1.bf16.msra.mxu0 0
        %934 = vmatprep.subr.bf16.mxu0 0
        %935 = vmatpush1.bf16.msra.mxu0 0
        %936 = vmatprep.subr.bf16.mxu0 0
        %937 = vmatpush1.bf16.msra.mxu0 0
        %938 = vmatprep.subr.bf16.mxu0 %v909
        %939 = vmatpush1.bf16.msra.mxu0 %v908
        %940 = vmatprep.subr.bf16.mxu0 %v907
        %941 = vmatpush1.bf16.msra.mxu0 %v906
        %942 = vmatprep.subr.bf16.mxu0 0
        %943 = vmatpush2.bf16.msra.mxu0 0
        %944 = vmatprep.subr.bf16.mxu0 0
        %945 = vmatpush2.bf16.msra.mxu0 0
        %946 = vmatprep.subr.bf16.mxu0 0
        %947 = vmatpush2.bf16.msra.mxu0 0
        %948 = vmatprep.subr.bf16.mxu0 0
        %949 = vmatpush2.bf16.msra.mxu0 0
        %950 = vmatprep.subr.bf16.mxu0 0
        %951 = vmatpush2.bf16.msra.mxu0 0
        %952 = vmatprep.subr.bf16.mxu0 0
        %953 = vmatpush2.bf16.msra.mxu0 0
        %954 = vmatprep.subr.bf16.mxu0 0
        %955 = vmatpush2.bf16.msra.mxu0 0
        %956 = vmatprep.subr.bf16.mxu0 0
        %957 = vmatpush2.bf16.msra.mxu0 0
        %958 = vmatprep.mubr.bf16.mxu0 0
        %959 = vmatmul.mubr.bf16.gmra.mxu0 %v921
        %v960 = vpop.f32.mrf.mxu0
        %v961 = vadd.f32 %v568, %v960
        %v962 = vpop.f32.mrf.mxu0
        %v963 = vadd.f32 %v570, %v962
        %v964 = vpop.f32.mrf.mxu0
        %v965 = vadd.f32 %v572, %v964
        %v966 = vpop.f32.mrf.mxu0
        %v967 = vadd.f32 %v574, %v966
        %968 = vmatprep.mubr.bf16.mxu0 0
        %969 = vmatmul.mubr.bf16.gmra.mxu0 %v924
        %v970 = vpop.f32.mrf.mxu0
        %v971 = vadd.f32 %v578, %v970
        %v972 = vpop.f32.mrf.mxu0
        %v973 = vadd.f32 %v580, %v972
        %v974 = vpop.f32.mrf.mxu0
        %v975 = vadd.f32 %v582, %v974
        %v976 = vpop.f32.mrf.mxu0
        %v977 = vadd.f32 %v584, %v976
        %978 = vdwg.mxu0
        %v979 = vld [vmem:[%s6 + $0x60] sm:$0xff]
        %v980 = vld [vmem:[%s6 + $0x68] sm:$0xff]
        %v981 = vld [vmem:[%s6 + $0x70] sm:$0xff]
        %v982 = vld [vmem:[%s6 + $0x78] sm:$0xff]
        %984 = vset.pattern.permute.xlu0 0
        %985 = vperm.xlu0 %984, %v979
        %v986 = vpop.permute.xlu0 %985
        %989 = vset.pattern.permute.xlu0 0
        %990 = vperm.xlu0 %989, %v980
        %v991 = vpop.permute.xlu0 %990
        %994 = vset.pattern.permute.xlu0 0
        %995 = vperm.xlu0 %994, %v981
        %v996 = vpop.permute.xlu0 %995
        %999 = vset.pattern.permute.xlu0 0
        %1000 = vperm.xlu0 %999, %v982
        %v1001 = vpop.permute.xlu0 %1000
        %v1003 = vadd.f32 %v961, %v986
        %v1004 = vadd.f32 %v963, %v986
        %v1005 = vadd.f32 %v965, %v991
        %v1006 = vadd.f32 %v967, %v991
        %v1007 = vadd.f32 %v971, %v996
        %v1008 = vadd.f32 %v973, %v996
        %v1009 = vadd.f32 %v975, %v1001
        %v1010 = vadd.f32 %v977, %v1001
        %v1011 = vmax.f32 %v1003, 0.0
        %v1012 = vmax.f32 %v1004, 0.0
        %v1013 = vmax.f32 %v1005, 0.0
        %v1014 = vmax.f32 %v1006, 0.0
        %v1015 = vmax.f32 %v1007, 0.0
        %v1016 = vmax.f32 %v1008, 0.0
        %v1017 = vmax.f32 %v1009, 0.0
        %v1018 = vmax.f32 %v1010, 0.0
        %v1019 = vpack.c.bf16 %v856, %v854
        %v1020 = vpack.c.bf16 %v857, %v855
        %v1021 = vpack.c.bf16 %v860, %v858
        %v1022 = vpack.c.bf16 %v861, %v859
        %v1023 = vld [vmem:[%s6 + $0x80] sm:$0xff]
        %v1024 = vld [vmem:[%s6 + $0x88] sm:$0xff]
        %v1025 = vld [vmem:[%s6 + $0x90] sm:$0xff]
        %v1026 = vld [vmem:[%s6 + $0x98] sm:$0xff]
        %1028 = vset.pattern.permute.xlu0 0
        %1029 = vperm.xlu0 %1028, %v1023
        %v1030 = vpop.permute.xlu0 %1029
        %1033 = vset.pattern.permute.xlu0 0
        %1034 = vperm.xlu0 %1033, %v1024
        %v1035 = vpop.permute.xlu0 %1034
        %1038 = vset.pattern.permute.xlu0 0
        %1039 = vperm.xlu0 %1038, %v1025
        %v1040 = vpop.permute.xlu0 %1039
        %1043 = vset.pattern.permute.xlu0 0
        %1044 = vperm.xlu0 %1043, %v1026
        %v1045 = vpop.permute.xlu0 %1044
        %v1051 = vunpack.c.l.b16 %v862
        %v1052 = vunpack.c.l.b16 %v863
        %v1053 = vunpack.c.l.b16 %v864
        %v1054 = vunpack.c.l.b16 %v865
        %v1055 = vpack.c.b16 %v1052, %v1051
        %v1056 = vpack.c.b16 %v1054, %v1053
        %v1058 = vsel %vm347, %v1055, 0
        %v1061 = vsel %vm347, %v1056, 0
        %1063 = vmatprep.subr.bf16.mxu0 0
        %1064 = vmatpush1.bf16.msra.mxu0 0
        %1065 = vmatprep.subr.bf16.mxu0 0
        %1066 = vmatpush1.bf16.msra.mxu0 0
        %1067 = vmatprep.subr.bf16.mxu0 0
        %1068 = vmatpush1.bf16.msra.mxu0 0
        %1069 = vmatprep.subr.bf16.mxu0 0
        %1070 = vmatpush1.bf16.msra.mxu0 0
        %1071 = vmatprep.subr.bf16.mxu0 0
        %1072 = vmatpush1.bf16.msra.mxu0 0
        %1073 = vmatprep.subr.bf16.mxu0 0
        %1074 = vmatpush1.bf16.msra.mxu0 0
        %1075 = vmatprep.subr.bf16.mxu0 %v1022
        %1076 = vmatpush1.bf16.msra.mxu0 %v1021
        %1077 = vmatprep.subr.bf16.mxu0 %v1020
        %1078 = vmatpush1.bf16.msra.mxu0 %v1019
        %1079 = vmatprep.subr.bf16.mxu0 0
        %1080 = vmatpush2.bf16.msra.mxu0 0
        %1081 = vmatprep.subr.bf16.mxu0 0
        %1082 = vmatpush2.bf16.msra.mxu0 0
        %1083 = vmatprep.subr.bf16.mxu0 0
        %1084 = vmatpush2.bf16.msra.mxu0 0
        %1085 = vmatprep.subr.bf16.mxu0 0
        %1086 = vmatpush2.bf16.msra.mxu0 0
        %1087 = vmatprep.subr.bf16.mxu0 0
        %1088 = vmatpush2.bf16.msra.mxu0 0
        %1089 = vmatprep.subr.bf16.mxu0 0
        %1090 = vmatpush2.bf16.msra.mxu0 0
        %1091 = vmatprep.subr.bf16.mxu0 0
        %1092 = vmatpush2.bf16.msra.mxu0 0
        %1093 = vmatprep.subr.bf16.mxu0 0
        %1094 = vmatpush2.bf16.msra.mxu0 0
        %1095 = vmatprep.mubr.bf16.mxu0 0
        %1096 = vmatmul.mubr.bf16.gmra.mxu0 %v1058
        %v1097 = vpop.f32.mrf.mxu0
        %v1098 = vadd.f32 %v1030, %v1097
        %v1099 = vpop.f32.mrf.mxu0
        %v1100 = vadd.f32 %v1030, %v1099
        %v1101 = vpop.f32.mrf.mxu0
        %v1102 = vadd.f32 %v1035, %v1101
        %v1103 = vpop.f32.mrf.mxu0
        %v1104 = vadd.f32 %v1035, %v1103
        %1105 = vmatprep.mubr.bf16.mxu0 0
        %1106 = vmatmul.mubr.bf16.gmra.mxu0 %v1061
        %v1107 = vpop.f32.mrf.mxu0
        %v1108 = vadd.f32 %v1040, %v1107
        %v1109 = vpop.f32.mrf.mxu0
        %v1110 = vadd.f32 %v1040, %v1109
        %v1111 = vpop.f32.mrf.mxu0
        %v1112 = vadd.f32 %v1045, %v1111
        %v1113 = vpop.f32.mrf.mxu0
        %v1114 = vadd.f32 %v1045, %v1113
        %1115 = vdwg.mxu0
        %v1116 = vmax.f32 %v1098, 0.0
        %v1117 = vmax.f32 %v1100, 0.0
        %v1118 = vmax.f32 %v1102, 0.0
        %v1119 = vmax.f32 %v1104, 0.0
        %v1120 = vmax.f32 %v1108, 0.0
        %v1121 = vmax.f32 %v1110, 0.0
        %v1122 = vmax.f32 %v1112, 0.0
        %v1123 = vmax.f32 %v1114, 0.0
        %v1124 = vpack.c.bf16 %v1118, %v1116
        %v1125 = vpack.c.bf16 %v1119, %v1117
        %v1126 = vpack.c.bf16 %v1122, %v1120
        %v1127 = vpack.c.bf16 %v1123, %v1121
        %v1128 = vld [vmem:[%s6 + $0xa0] sm:$0xff]
        %v1129 = vld [vmem:[%s6 + $0xa8] sm:$0xff]
        %v1130 = vld [vmem:[%s6 + $0xb0] sm:$0xff]
        %v1131 = vld [vmem:[%s6 + $0xb8] sm:$0xff]
        %1133 = vset.pattern.permute.xlu0 0
        %1134 = vperm.xlu0 %1133, %v1128
        %v1135 = vpop.permute.xlu0 %1134
        %1138 = vset.pattern.permute.xlu0 0
        %1139 = vperm.xlu0 %1138, %v1129
        %v1140 = vpop.permute.xlu0 %1139
        %1143 = vset.pattern.permute.xlu0 0
        %1144 = vperm.xlu0 %1143, %v1130
        %v1145 = vpop.permute.xlu0 %1144
        %1148 = vset.pattern.permute.xlu0 0
        %1149 = vperm.xlu0 %1148, %v1131
        %v1150 = vpop.permute.xlu0 %1149
        %v1156 = vunpack.c.l.b16 %v866
        %v1157 = vunpack.c.l.b16 %v867
        %v1158 = vunpack.c.l.b16 %v868
        %v1159 = vunpack.c.l.b16 %v869
        %v1160 = vpack.c.b16 %v1157, %v1156
        %v1161 = vpack.c.b16 %v1159, %v1158
        %v1163 = vsel %vm347, %v1160, 0
        %v1166 = vsel %vm347, %v1161, 0
        %1168 = vmatprep.subr.bf16.mxu0 0
        %1169 = vmatpush1.bf16.msra.mxu0 0
        %1170 = vmatprep.subr.bf16.mxu0 0
        %1171 = vmatpush1.bf16.msra.mxu0 0
        %1172 = vmatprep.subr.bf16.mxu0 0
        %1173 = vmatpush1.bf16.msra.mxu0 0
        %1174 = vmatprep.subr.bf16.mxu0 0
        %1175 = vmatpush1.bf16.msra.mxu0 0
        %1176 = vmatprep.subr.bf16.mxu0 0
        %1177 = vmatpush1.bf16.msra.mxu0 0
        %1178 = vmatprep.subr.bf16.mxu0 0
        %1179 = vmatpush1.bf16.msra.mxu0 0
        %1180 = vmatprep.subr.bf16.mxu0 %v1127
        %1181 = vmatpush1.bf16.msra.mxu0 %v1126
        %1182 = vmatprep.subr.bf16.mxu0 %v1125
        %1183 = vmatpush1.bf16.msra.mxu0 %v1124
        %1184 = vmatprep.subr.bf16.mxu0 0
        %1185 = vmatpush2.bf16.msra.mxu0 0
        %1186 = vmatprep.subr.bf16.mxu0 0
        %1187 = vmatpush2.bf16.msra.mxu0 0
        %1188 = vmatprep.subr.bf16.mxu0 0
        %1189 = vmatpush2.bf16.msra.mxu0 0
        %1190 = vmatprep.subr.bf16.mxu0 0
        %1191 = vmatpush2.bf16.msra.mxu0 0
        %1192 = vmatprep.subr.bf16.mxu0 0
        %1193 = vmatpush2.bf16.msra.mxu0 0
        %1194 = vmatprep.subr.bf16.mxu0 0
        %1195 = vmatpush2.bf16.msra.mxu0 0
        %1196 = vmatprep.subr.bf16.mxu0 0
        %1197 = vmatpush2.bf16.msra.mxu0 0
        %1198 = vmatprep.subr.bf16.mxu0 0
        %1199 = vmatpush2.bf16.msra.mxu0 0
        %1200 = vmatprep.mubr.bf16.mxu0 0
        %1201 = vmatmul.mubr.bf16.gmra.mxu0 %v1163
        %v1202 = vpop.f32.mrf.mxu0
        %v1203 = vadd.f32 %v1135, %v1202
        %v1204 = vpop.f32.mrf.mxu0
        %v1205 = vadd.f32 %v1135, %v1204
        %v1206 = vpop.f32.mrf.mxu0
        %v1207 = vadd.f32 %v1140, %v1206
        %v1208 = vpop.f32.mrf.mxu0
        %v1209 = vadd.f32 %v1140, %v1208
        %1210 = vmatprep.mubr.bf16.mxu0 0
        %1211 = vmatmul.mubr.bf16.gmra.mxu0 %v1166
        %v1212 = vpop.f32.mrf.mxu0
        %v1213 = vadd.f32 %v1145, %v1212
        %v1214 = vpop.f32.mrf.mxu0
        %v1215 = vadd.f32 %v1145, %v1214
        %v1216 = vpop.f32.mrf.mxu0
        %v1217 = vadd.f32 %v1150, %v1216
        %v1218 = vpop.f32.mrf.mxu0
        %v1219 = vadd.f32 %v1150, %v1218
        %1220 = vdwg.mxu0
        %v1221 = vxor.u32 %v1203, 2147483648
        %v1222 = vxor.u32 %v1205, 2147483648
        %v1223 = vxor.u32 %v1207, 2147483648
        %v1224 = vxor.u32 %v1209, 2147483648
        %v1225 = vxor.u32 %v1213, 2147483648
        %v1226 = vxor.u32 %v1215, 2147483648
        %v1227 = vxor.u32 %v1217, 2147483648
        %v1228 = vxor.u32 %v1219, 2147483648
        %v1229 = vmul.f32 %v1221, 1.442695
        %v1230 = vpow.pop %v1229
        %v1231 = vmul.f32 %v1222, 1.442695
        %v1232 = vpow.pop %v1231
        %v1233 = vmul.f32 %v1223, 1.442695
        %v1234 = vpow.pop %v1233
        %v1235 = vmul.f32 %v1224, 1.442695
        %v1236 = vpow.pop %v1235
        %v1237 = vmul.f32 %v1225, 1.442695
        %v1238 = vpow.pop %v1237
        %v1239 = vmul.f32 %v1226, 1.442695
        %v1240 = vpow.pop %v1239
        %v1241 = vmul.f32 %v1227, 1.442695
        %v1242 = vpow.pop %v1241
        %v1243 = vmul.f32 %v1228, 1.442695
        %v1244 = vpow.pop %v1243
        %v1245 = vadd.f32 %v1230, 1.0
        %v1246 = vadd.f32 %v1232, 1.0
        %v1247 = vadd.f32 %v1234, 1.0
        %v1248 = vadd.f32 %v1236, 1.0
        %v1249 = vadd.f32 %v1238, 1.0
        %v1250 = vadd.f32 %v1240, 1.0
        %v1251 = vadd.f32 %v1242, 1.0
        %v1252 = vadd.f32 %v1244, 1.0
        %v1253 = vrcp.pop %v1245
        %v1254 = vmul.f32 1.0, %v1253
        %v1255 = vrcp.pop %v1246
        %v1256 = vmul.f32 1.0, %v1255
        %v1257 = vrcp.pop %v1247
        %v1258 = vmul.f32 1.0, %v1257
        %v1259 = vrcp.pop %v1248
        %v1260 = vmul.f32 1.0, %v1259
        %v1261 = vrcp.pop %v1249
        %v1262 = vmul.f32 1.0, %v1261
        %v1263 = vrcp.pop %v1250
        %v1264 = vmul.f32 1.0, %v1263
        %v1265 = vrcp.pop %v1251
        %v1266 = vmul.f32 1.0, %v1265
        %v1267 = vrcp.pop %v1252
        %v1268 = vmul.f32 1.0, %v1267
        %v1269 = vmul.f32 %v1254, %v618
        %v1270 = vmul.f32 %v1256, %v619
        %v1271 = vmul.f32 %v1258, %v620
        %v1272 = vmul.f32 %v1260, %v621
        %v1273 = vmul.f32 %v1262, %v622
        %v1274 = vmul.f32 %v1264, %v623
        %v1275 = vmul.f32 %v1266, %v624
        %v1276 = vmul.f32 %v1268, %v625
        %v1277 = vpack.c.bf16 %v1271, %v1269
        %v1278 = vpack.c.bf16 %v1272, %v1270
        %v1279 = vpack.c.bf16 %v1275, %v1273
        %v1280 = vpack.c.bf16 %v1276, %v1274
        %v1285 = vunpack.c.l.b16 %v874
        %v1286 = vunpack.c.l.b16 %v875
        %v1287 = vunpack.c.l.b16 %v876
        %v1288 = vunpack.c.l.b16 %v877
        %v1289 = vpack.c.b16 %v1286, %v1285
        %v1290 = vpack.c.b16 %v1288, %v1287
        %v1292 = vsel %vm347, %v1289, 0
        %v1295 = vsel %vm347, %v1290, 0
        %1297 = vmatprep.subr.bf16.mxu0 0
        %1298 = vmatpush1.bf16.msra.mxu0 0
        %1299 = vmatprep.subr.bf16.mxu0 0
        %1300 = vmatpush1.bf16.msra.mxu0 0
        %1301 = vmatprep.subr.bf16.mxu0 0
        %1302 = vmatpush1.bf16.msra.mxu0 0
        %1303 = vmatprep.subr.bf16.mxu0 0
        %1304 = vmatpush1.bf16.msra.mxu0 0
        %1305 = vmatprep.subr.bf16.mxu0 0
        %1306 = vmatpush1.bf16.msra.mxu0 0
        %1307 = vmatprep.subr.bf16.mxu0 0
        %1308 = vmatpush1.bf16.msra.mxu0 0
        %1309 = vmatprep.subr.bf16.mxu0 %v1280
        %1310 = vmatpush1.bf16.msra.mxu0 %v1279
        %1311 = vmatprep.subr.bf16.mxu0 %v1278
        %1312 = vmatpush1.bf16.msra.mxu0 %v1277
        %1313 = vmatprep.subr.bf16.mxu0 0
        %1314 = vmatpush2.bf16.msra.mxu0 0
        %1315 = vmatprep.subr.bf16.mxu0 0
        %1316 = vmatpush2.bf16.msra.mxu0 0
        %1317 = vmatprep.subr.bf16.mxu0 0
        %1318 = vmatpush2.bf16.msra.mxu0 0
        %1319 = vmatprep.subr.bf16.mxu0 0
        %1320 = vmatpush2.bf16.msra.mxu0 0
        %1321 = vmatprep.subr.bf16.mxu0 0
        %1322 = vmatpush2.bf16.msra.mxu0 0
        %1323 = vmatprep.subr.bf16.mxu0 0
        %1324 = vmatpush2.bf16.msra.mxu0 0
        %1325 = vmatprep.subr.bf16.mxu0 0
        %1326 = vmatpush2.bf16.msra.mxu0 0
        %1327 = vmatprep.subr.bf16.mxu0 0
        %1328 = vmatpush2.bf16.msra.mxu0 0
        %1329 = vmatprep.mubr.bf16.mxu0 0
        %1330 = vmatmul.mubr.bf16.gmra.mxu0 %v1292
        %v1331 = vpop.f32.mrf.mxu0
        %v1332 = vadd.f32 %v764, %v1331
        %v1333 = vpop.f32.mrf.mxu0
        %v1334 = vadd.f32 %v766, %v1333
        %v1335 = vpop.f32.mrf.mxu0
        %v1336 = vadd.f32 %v768, %v1335
        %v1337 = vpop.f32.mrf.mxu0
        %v1338 = vadd.f32 %v770, %v1337
        %1339 = vmatprep.mubr.bf16.mxu0 0
        %1340 = vmatmul.mubr.bf16.gmra.mxu0 %v1295
        %v1341 = vpop.f32.mrf.mxu0
        %v1342 = vadd.f32 %v774, %v1341
        %v1343 = vpop.f32.mrf.mxu0
        %v1344 = vadd.f32 %v776, %v1343
        %v1345 = vpop.f32.mrf.mxu0
        %v1346 = vadd.f32 %v778, %v1345
        %v1347 = vpop.f32.mrf.mxu0
        %v1348 = vadd.f32 %v780, %v1347
        %1349 = vdwg.mxu0
        %v1350 = vld [vmem:[%s6 + $0xc0] sm:$0xff]
        %v1351 = vld [vmem:[%s6 + $0xc8] sm:$0xff]
        %v1352 = vld [vmem:[%s6 + $0xd0] sm:$0xff]
        %v1353 = vld [vmem:[%s6 + $0xd8] sm:$0xff]
        %1355 = vset.pattern.permute.xlu0 0
        %1356 = vperm.xlu0 %1355, %v1350
        %v1357 = vpop.permute.xlu0 %1356
        %1360 = vset.pattern.permute.xlu0 0
        %1361 = vperm.xlu0 %1360, %v1351
        %v1362 = vpop.permute.xlu0 %1361
        %1365 = vset.pattern.permute.xlu0 0
        %1366 = vperm.xlu0 %1365, %v1352
        %v1367 = vpop.permute.xlu0 %1366
        %1370 = vset.pattern.permute.xlu0 0
        %1371 = vperm.xlu0 %1370, %v1353
        %v1372 = vpop.permute.xlu0 %1371
        %v1374 = vadd.f32 %v1332, %v1357
        %v1375 = vadd.f32 %v1334, %v1357
        %v1376 = vadd.f32 %v1336, %v1362
        %v1377 = vadd.f32 %v1338, %v1362
        %v1378 = vadd.f32 %v1342, %v1367
        %v1379 = vadd.f32 %v1344, %v1367
        %v1380 = vadd.f32 %v1346, %v1372
        %v1381 = vadd.f32 %v1348, %v1372
        %v1382 = vmax.f32 %v1374, 0.0
        %v1383 = vmax.f32 %v1375, 0.0
        %v1384 = vmax.f32 %v1376, 0.0
        %v1385 = vmax.f32 %v1377, 0.0
        %v1386 = vmax.f32 %v1378, 0.0
        %v1387 = vmax.f32 %v1379, 0.0
        %v1388 = vmax.f32 %v1380, 0.0
        %v1389 = vmax.f32 %v1381, 0.0
        %v1390 = vadd.f32 %v1011, %v1382
        %v1391 = vadd.f32 %v1012, %v1383
        %v1392 = vadd.f32 %v1013, %v1384
        %v1393 = vadd.f32 %v1014, %v1385
        %v1394 = vadd.f32 %v1015, %v1386
        %v1395 = vadd.f32 %v1016, %v1387
        %v1396 = vadd.f32 %v1017, %v1388
        %v1397 = vadd.f32 %v1018, %v1389
        %1398 = vst [vmem:[%s286] sm:$0xff] %v1390
        %1399 = vst [vmem:[%s286 + $0x8] sm:$0xff] %v1391
        %1400 = vst [vmem:[%s286 + $0x10] sm:$0xff] %v1392
        %1401 = vst [vmem:[%s286 + $0x18] sm:$0xff] %v1393
        %1402 = vst [vmem:[%s286 + $0x20] sm:$0xff] %v1394
        %1403 = vst [vmem:[%s286 + $0x28] sm:$0xff] %v1395
        %1404 = vst [vmem:[%s286 + $0x30] sm:$0xff] %v1396
        %1405 = vst [vmem:[%s286 + $0x38] sm:$0xff] %v1397
        %s1406 = sand.u32 %s186, 1
        %s1407 = scalar_lea.sflag [#allocation3], %s1406
        %s1408 = sand.u32 %s186, 1
        %s1409 = smul.addr %s1408, 64
        %s1410 = scalar_lea.vmem [#allocation2], %s1409
        // Predicated region
        $region49: #{tpu_custom_call.1} parent=47 // pred_check
          %p1411 = pneg %p196
        $region50: #{tpu_custom_call.1} parent=47 // pred_check_branch
          %1413 = sbr.rel (%p1411) target = $region52
        $region51: #{tpu_custom_call.1} parent=47 // pred_region
          %s1415 = ssub.s32 1024, 1024
          %1416 = vsyncadd %s1407, %s1415
          %s1417 = smul.addr %s21, 8
          %s1418 = smul.addr %s1417, 128
          %s1419 = scalar_lea.hbm %s7, %s1418
          %s1420 = sshll.u32 %s1410, 4
          %s1421 = int_to_ptr.vmem [resolvable:$true] %s1420
          %1426 = dma.vmem_to_hbm [thread:$0]  %s1421, 1024, %s1419, %s1407, 256, 256, 16
        $region52: #{tpu_custom_call.1} parent=47 // pred_fallthru
          _
      $region48: #{tpu_custom_call.1} parent=5 // pred_fallthru
        _
      %p1427 = scmp.le.s32.totalorder 2, %s16
      // Predicated region
      $region53: #{tpu_custom_call.1} parent=5 // pred_check
        %p1428 = pneg %p1427
      $region54: #{tpu_custom_call.1} parent=5 // pred_check_branch
        %1430 = sbr.rel (%p1428) target = $region56
      $region55: #{tpu_custom_call.1} parent=5 // pred_region
        %s1431 = ssub.s32 %s16, 2
        // Predicated region
        $region57: #{tpu_custom_call.1} parent=55 // pred_check
          %p1432 = pneg %p202
        $region58: #{tpu_custom_call.1} parent=55 // pred_check_branch
          %1434 = sbr.rel (%p1432) target = $region60
        $region59: #{tpu_custom_call.1} parent=55 // pred_region
          %s1435 = sand.u32 %s187, 1
          %s1436 = scalar_lea.sflag [#allocation3], %s1435
          %s1437 = sand.u32 %s187, 1
          %s1438 = smul.addr %s1437, 64
          %s1439 = scalar_lea.vmem [#allocation2], %s1438
          %1440 = dma.done %s1436, 1024
        $region60: #{tpu_custom_call.1} parent=55 // pred_fallthru
          _
      $region56: #{tpu_custom_call.1} parent=5 // pred_fallthru
        _
    $region6: #{tpu_custom_call.1} parent=1 // loop_footer
      %s20 = sadd.s32 1, %s16
    $region7: #{tpu_custom_call.1} parent=1 // loop_footer_branch
      %15 = sbr.rel target = $region3
    $region8: #{tpu_custom_call.1} parent=1 // loop_exit
      _
    %1441 = vsyncpa [#allocation3], 1
    %s1442 = scalar_lea.sflag [#allocation3], 1
    %1443 = vsyncpa %s1442, 1

</llo_original>
